<compile_context>
chip_gen: v7x
topology: tpu7x:2x2x1
jax: 0.10.0
libtpu: 0.0.40
codegen_flags: <defaults>
</compile_context>

<pallas_src>
import functools
import math

import jax
import jax.numpy as jnp
from jax import lax
from jax.experimental import pallas as pl
from jax.experimental.pallas import tpu as pltpu

_LN_EPS = 1e-5  # torch.nn.LayerNorm default


def _head_kernel(x_ref, w1p_ref, s1_ref, c1_ref, w2_ref, b2_ref, g2_ref, be2_ref,
                 out_ref, acc_ref, rsum_ref, rsq_ref, *, d, eps):
    """One (batch-tile, K-slab) grid step of the fused MLP head."""
    k = pl.program_id(1)

    @pl.when(k == 0)
    def _():
        acc_ref[...] = jnp.zeros_like(acc_ref)
        rsum_ref[...] = jnp.zeros_like(rsum_ref)
        rsq_ref[...] = jnp.zeros_like(rsq_ref)

    # ---- K-streamed first matmul on raw (un-normalized) x; LN0 is applied analytically
    #      in the finalize step via the folded (s1, c1, mu, rstd) terms. ----
    x = x_ref[...]                                   # (tb, tk), input dtype
    xf = x.astype(jnp.float32)
    rsum_ref[...] += jnp.sum(xf, axis=-1, keepdims=True)
    rsq_ref[...] += jnp.sum(xf * xf, axis=-1, keepdims=True)

    acc_ref[...] += jnp.dot(x.astype(jnp.bfloat16), w1p_ref[...],
                            preferred_element_type=jnp.float32)

    @pl.when(k == pl.num_programs(1) - 1)
    def _():
        inv_d = 1.0 / d
        mu = rsum_ref[...] * inv_d                        # (tb, 1)
        # biased variance (matches torch LayerNorm); E[x^2]-mu^2 is fine in f32 for
        # zero-centered activations.
        var = rsq_ref[...] * inv_d - mu * mu
        rstd = lax.rsqrt(var + eps)

        # ---- folded LayerNorm0 + Linear1 + ReLU ----
        h1 = rstd * (acc_ref[...] - mu * s1_ref[...]) + c1_ref[...]
        h1 = jnp.maximum(h1, 0.0)

        # ---- Linear2 + ReLU (bf16 MXU operands, f32 accumulation) ----
        h2 = jnp.dot(h1.astype(jnp.bfloat16), w2_ref[...],
                     preferred_element_type=jnp.float32)
        h2 = jnp.maximum(h2 + b2_ref[...], 0.0)

        # ---- final LayerNorm ----
        mu2 = jnp.mean(h2, axis=-1, keepdims=True)
        hc = h2 - mu2
        var2 = jnp.mean(hc * hc, axis=-1, keepdims=True)
        y = hc * lax.rsqrt(var2 + eps) * g2_ref[...] + be2_ref[...]

        # single lane-dense, full-width store of the (tb, H2) tile
        out_ref[...] = y.astype(out_ref.dtype)


def _pick_block_k(d, requested):
    """Largest K tile <= 2048 that is a multiple of 128 and divides D (else full D)."""
    if requested is not None:
        tk = int(requested)
    else:
        tk = d
        for cand in range(128, min(d, 2048) + 1, 128):
            if d % cand == 0:
                tk = cand
    assert d % tk == 0, f"D={d} must be divisible by block_k={tk}"
    assert tk == d or tk % 128 == 0, f"block_k={tk} must be a multiple of 128 (or == D)"
    return tk


def core_net_wrapper_head(feat, params, *, block_b=256, block_k=None,
                          vmem_limit_bytes=56 << 20, single_buffer_params=True):
    """Flatten + fused MLP head of CoreNetWrapper.

    feat   : [B, C, H, W] core_net output (any float dtype, kept as-is; no wrapper cast).
    params : dict with
        'ln0_g','ln0_b' : [D]       (D = C*H*W)
        'w1','b1'       : [D, H1], [H1]
        'w2','b2'       : [H1, H2], [H2]
        'ln2_g','ln2_b' : [H2]
    """
    B = feat.shape[0]
    D = int(math.prod(feat.shape[1:]))
    x = jnp.reshape(feat, (B, D))          # flatten(dim=1); dtype untouched (cast in-kernel)

    # ---- fold LayerNorm0 into the first Linear (all in f32 on the host/XLA side) ----
    g0 = params["ln0_g"].astype(jnp.float32)
    be0 = params["ln0_b"].astype(jnp.float32)
    w1_f32 = params["w1"].astype(jnp.float32)
    w1p_f32 = g0[:, None] * w1_f32                       # (D, H1)
    w1p = w1p_f32.astype(jnp.bfloat16)                   # streamed MXU operand
    s1 = jnp.sum(w1p_f32, axis=0).reshape(1, -1)         # (1, H1)  colsum(g0*w1), f32
    c1 = (be0 @ w1_f32
          + params["b1"].astype(jnp.float32)).reshape(1, -1)   # (1, H1)

    w2 = params["w2"].astype(jnp.bfloat16)
    H1, H2 = int(w1p.shape[1]), int(w2.shape[1])
    b2 = params["b2"].astype(jnp.float32).reshape(1, H2)
    g2 = params["ln2_g"].astype(jnp.float32).reshape(1, H2)
    be2 = params["ln2_b"].astype(jnp.float32).reshape(1, H2)

    # ---- tiling ----
    tb = min(block_b, B)
    if tb == B and B % 2 == 0 and (B // 2) % 8 == 0:
        tb = B // 2            # keep >= 2 batch tiles so the x-tile DMA overlaps compute
    assert B % tb == 0, f"batch {B} must be divisible by batch tile {tb}"
    assert tb == B or tb % 8 == 0, f"batch tile {tb} must be a multiple of 8"
    tk = _pick_block_k(D, block_k)
    grid = (B // tb, D // tk)

    kernel = functools.partial(_head_kernel, d=float(D), eps=_LN_EPS)

    flops = 2 * B * D * H1 + 2 * B * H1 * H2 + 12 * B * (H1 + H2)
    bytes_accessed = (x.size * x.dtype.itemsize
                      + w1p.size * 2 * (B // tb)          # w1' re-streamed per batch tile
                      + w2.size * 2
                      + (s1.size + c1.size + b2.size + g2.size + be2.size) * 4
                      + B * H2 * 4)

    def _run(use_single_buffer):
        pm = pl.Buffered(1) if use_single_buffer else None

        def resident(shape):
            # constant block index -> no re-DMA across the grid; single-buffer when supported
            if pm is None:
                return pl.BlockSpec(shape, lambda i, k: (0, 0))
            return pl.BlockSpec(shape, lambda i, k: (0, 0), pipeline_mode=pm)

        return pl.pallas_call(
            kernel,
            out_shape=jax.ShapeDtypeStruct((B, H2), jnp.float32),
            grid=grid,
            in_specs=[
                pl.BlockSpec((tb, tk), lambda i, k: (i, k)),   # x: (batch, K) tiled
                pl.BlockSpec((tk, H1), lambda i, k: (k, 0)),   # w1': K-streamed slabs
                resident((1, H1)),                             # s1
                resident((1, H1)),                             # c1
                resident((H1, H2)),                            # w2
                resident((1, H2)),                             # b2
                resident((1, H2)),                             # ln2 gamma
                resident((1, H2)),                             # ln2 beta
            ],
            out_specs=pl.BlockSpec((tb, H2), lambda i, k: (i, 0)),
            scratch_shapes=[
                pltpu.VMEM((tb, H1), jnp.float32),   # f32 accumulator for x @ w1'
                pltpu.VMEM((tb, 1), jnp.float32),    # running sum(x)
                pltpu.VMEM((tb, 1), jnp.float32),    # running sum(x^2)
            ],
            compiler_params=pltpu.CompilerParams(
                dimension_semantics=("parallel", "arbitrary"),
                vmem_limit_bytes=int(vmem_limit_bytes)),
            cost_estimate=pl.CostEstimate(
                flops=int(flops),
                transcendentals=int(2 * B),
                bytes_accessed=int(bytes_accessed)),
        )(x, w1p, s1, c1, w2, b2, g2, be2)

    if single_buffer_params:
        try:
            return _run(True)
        except Exception:
            # pl.Buffered(1) not supported by this jax version -> default double-buffering
            pass
    return _run(False)


def _reference(feat, params):
    """Pure-JAX f32 reference of the module forward (LayerNorm -> Linear/ReLU x2 -> LayerNorm)."""
    B = feat.shape[0]
    x = jnp.reshape(feat, (B, -1)).astype(jnp.float32)

    def ln(v, g, b):
        mu = jnp.mean(v, axis=-1, keepdims=True)
        var = jnp.mean((v - mu) ** 2, axis=-1, keepdims=True)
        return (v - mu) * lax.rsqrt(var + _LN_EPS) * g + b

    h = ln(x, params["ln0_g"].astype(jnp.float32), params["ln0_b"].astype(jnp.float32))
    h = jnp.maximum(h @ params["w1"].astype(jnp.float32) + params["b1"], 0.0)
    h = jnp.maximum(h @ params["w2"].astype(jnp.float32) + params["b2"], 0.0)
    return ln(h, params["ln2_g"].astype(jnp.float32), params["ln2_b"].astype(jnp.float32))


if __name__ == "__main__":
    key = jax.random.PRNGKey(0)
    ks = jax.random.split(key, 9)

    # Small-shape stand-in for the real module (core_net -> [B, 512, 7, 7],
    # mlp_widths=[4096, 1024]): core features [B, 16, 8, 8], mlp_widths=[256, 128].
    B, C, Hs, Ws = 32, 16, 8, 8
    D = C * Hs * Ws            # 1024   (real module: 25088)
    H1, H2 = 256, 128          # real module: 4096, 1024

    feat = jax.random.normal(ks[0], (B, C, Hs, Ws), jnp.float32)
    params = {
        "ln0_g": 1.0 + 0.1 * jax.random.normal(ks[1], (D,), jnp.float32),
        "ln0_b": 0.1 * jax.random.normal(ks[2], (D,), jnp.float32),
        "w1": jax.random.normal(ks[3], (D, H1), jnp.float32) / math.sqrt(D),
        "b1": 0.1 * jax.random.normal(ks[4], (H1,), jnp.float32),
        "w2": jax.random.normal(ks[5], (H1, H2), jnp.float32) / math.sqrt(H1),
        "b2": 0.1 * jax.random.normal(ks[6], (H2,), jnp.float32),
        "ln2_g": 1.0 + 0.1 * jax.random.normal(ks[7], (H2,), jnp.float32),
        "ln2_b": 0.1 * jax.random.normal(ks[8], (H2,), jnp.float32),
    }

    # 2 batch tiles x 4 K-slabs -> exercises the K-streamed accumulator + pipelining.
    out = core_net_wrapper_head(feat, params, block_b=16, block_k=256)
    out = jax.block_until_ready(out)

    ref = _reference(feat, params)
    assert out.shape == (B, H2), out.shape
    max_err = float(jnp.max(jnp.abs(out - ref)))
    assert jnp.allclose(out, ref, atol=8e-2, rtol=8e-2), (
        f"mismatch vs reference (max |err|={max_err})")

    print("KERNEL_OK")
</pallas_src>

<mosaic_0001>
module attributes {stable_mosaic.version = 11 : i64} {
  func.func @_head_kernel(%arg0: i32, %arg1: i32, %arg2: memref<16x256xf32, #tpu.memory_space<vmem>>, %arg3: memref<256x256xbf16, #tpu.memory_space<vmem>>, %arg4: memref<1x256xf32, #tpu.memory_space<vmem>>, %arg5: memref<1x256xf32, #tpu.memory_space<vmem>>, %arg6: memref<256x128xbf16, #tpu.memory_space<vmem>>, %arg7: memref<1x128xf32, #tpu.memory_space<vmem>>, %arg8: memref<1x128xf32, #tpu.memory_space<vmem>>, %arg9: memref<1x128xf32, #tpu.memory_space<vmem>>, %arg10: memref<16x128xf32, #tpu.memory_space<vmem>>, %arg11: memref<16x256xf32, #tpu.memory_space<vmem>>, %arg12: memref<16x1xf32, #tpu.memory_space<vmem>>, %arg13: memref<16x1xf32, #tpu.memory_space<vmem>>) attributes {dimension_semantics = [#tpu.dimension_semantics<parallel>, #tpu.dimension_semantics<arbitrary>], iteration_bounds = array<i64: 2, 4>, scalar_prefetch = 0 : i64, scratch_operands = 3 : i64, tpu.core_type = #tpu.core_type<tc>, window_params = [{transform_indices = @transform_0, window_bounds = array<i64: 16, 256>}, {transform_indices = @transform_1, window_bounds = array<i64: 256, 256>}, {pipeline_mode = #tpu.pipeline_mode<synchronous>, transform_indices = @transform_2, window_bounds = array<i64: 1, 256>}, {pipeline_mode = #tpu.pipeline_mode<synchronous>, transform_indices = @transform_3, window_bounds = array<i64: 1, 256>}, {pipeline_mode = #tpu.pipeline_mode<synchronous>, transform_indices = @transform_4, window_bounds = array<i64: 256, 128>}, {pipeline_mode = #tpu.pipeline_mode<synchronous>, transform_indices = @transform_5, window_bounds = array<i64: 1, 128>}, {pipeline_mode = #tpu.pipeline_mode<synchronous>, transform_indices = @transform_6, window_bounds = array<i64: 1, 128>}, {pipeline_mode = #tpu.pipeline_mode<synchronous>, transform_indices = @transform_7, window_bounds = array<i64: 1, 128>}, {transform_indices = @transform_8, window_bounds = array<i64: 16, 128>}]} {
    %c0_i32 = arith.constant 0 : i32
    %0 = arith.cmpi eq, %arg1, %c0_i32 : i32
    %1 = arith.extui %0 : i1 to i32
    %c0_i32_0 = arith.constant 0 : i32
    %2 = arith.cmpi ne, %1, %c0_i32_0 : i32
    scf.if %2 {
      %cst_19 = arith.constant 0.000000e+00 : f32
      %24 = vector.broadcast %cst_19 : f32 to vector<16x256xf32>
      %c0_20 = arith.constant 0 : index
      %c0_21 = arith.constant 0 : index
      %25 = vector.load %arg11[%c0_20, %c0_21] : memref<16x256xf32, #tpu.memory_space<vmem>>, vector<16x256xf32>
      tpu.vector_store %arg11[%c0_20, %c0_21], %24 {strides = array<i32>} : memref<16x256xf32, #tpu.memory_space<vmem>>, vector<16x256xf32>,
      %cst_22 = arith.constant 0.000000e+00 : f32
      %26 = vector.broadcast %cst_22 : f32 to vector<16x1xf32>
      %c0_23 = arith.constant 0 : index
      %c0_24 = arith.constant 0 : index
      %27 = vector.load %arg12[%c0_23, %c0_24] : memref<16x1xf32, #tpu.memory_space<vmem>>, vector<16x1xf32>
      tpu.vector_store %arg12[%c0_23, %c0_24], %26 {strides = array<i32>} : memref<16x1xf32, #tpu.memory_space<vmem>>, vector<16x1xf32>,
      %cst_25 = arith.constant 0.000000e+00 : f32
      %28 = vector.broadcast %cst_25 : f32 to vector<16x1xf32>
      %c0_26 = arith.constant 0 : index
      %c0_27 = arith.constant 0 : index
      %29 = vector.load %arg13[%c0_26, %c0_27] : memref<16x1xf32, #tpu.memory_space<vmem>>, vector<16x1xf32>
      tpu.vector_store %arg13[%c0_26, %c0_27], %28 {strides = array<i32>} : memref<16x1xf32, #tpu.memory_space<vmem>>, vector<16x1xf32>,
    } else {
    }
    %c0 = arith.constant 0 : index
    %c0_1 = arith.constant 0 : index
    %3 = vector.load %arg2[%c0, %c0_1] : memref<16x256xf32, #tpu.memory_space<vmem>>, vector<16x256xf32>
    %c0_2 = arith.constant 0 : index
    %c0_3 = arith.constant 0 : index
    %4 = vector.load %arg12[%c0_2, %c0_3] : memref<16x1xf32, #tpu.memory_space<vmem>>, vector<16x1xf32>
    %cst = arith.constant dense<0.000000e+00> : vector<16xf32>
    %5 = vector.multi_reduction <add>, %3, %cst [1] : vector<16x256xf32> to vector<16xf32>
    %6 = vector.shape_cast %5 : vector<16xf32> to vector<16x1xf32>
    %7 = arith.addf %4, %6 : vector<16x1xf32>
    %c0_4 = arith.constant 0 : index
    %c0_5 = arith.constant 0 : index
    %8 = vector.load %arg12[%c0_4, %c0_5] : memref<16x1xf32, #tpu.memory_space<vmem>>, vector<16x1xf32>
    tpu.vector_store %arg12[%c0_4, %c0_5], %7 {strides = array<i32>} : memref<16x1xf32, #tpu.memory_space<vmem>>, vector<16x1xf32>,
    %c0_6 = arith.constant 0 : index
    %c0_7 = arith.constant 0 : index
    %9 = vector.load %arg13[%c0_6, %c0_7] : memref<16x1xf32, #tpu.memory_space<vmem>>, vector<16x1xf32>
    %10 = arith.mulf %3, %3 : vector<16x256xf32>
    %cst_8 = arith.constant dense<0.000000e+00> : vector<16xf32>
    %11 = vector.multi_reduction <add>, %10, %cst_8 [1] : vector<16x256xf32> to vector<16xf32>
    %12 = vector.shape_cast %11 : vector<16xf32> to vector<16x1xf32>
    %13 = arith.addf %9, %12 : vector<16x1xf32>
    %c0_9 = arith.constant 0 : index
    %c0_10 = arith.constant 0 : index
    %14 = vector.load %arg13[%c0_9, %c0_10] : memref<16x1xf32, #tpu.memory_space<vmem>>, vector<16x1xf32>
    tpu.vector_store %arg13[%c0_9, %c0_10], %13 {strides = array<i32>} : memref<16x1xf32, #tpu.memory_space<vmem>>, vector<16x1xf32>,
    %c0_11 = arith.constant 0 : index
    %c0_12 = arith.constant 0 : index
    %15 = vector.load %arg11[%c0_11, %c0_12] : memref<16x256xf32, #tpu.memory_space<vmem>>, vector<16x256xf32>
    %16 = arith.truncf %3 : vector<16x256xf32> to vector<16x256xbf16>
    %c0_13 = arith.constant 0 : index
    %c0_14 = arith.constant 0 : index
    %17 = vector.load %arg3[%c0_13, %c0_14] : memref<256x256xbf16, #tpu.memory_space<vmem>>, vector<256x256xbf16>
    %cst_15 = arith.constant dense<0.000000e+00> : vector<16x256xf32>
    %18 = tpu.matmul %16, %17, %cst_15 {dimension_numbers = #tpu.dot_dimension_numbers<[1], [0], [0], [1], [0, 0, 1, 1], [], []>} : vector<16x256xbf16>, vector<256x256xbf16>, vector<16x256xf32> -> vector<16x256xf32>
    %19 = arith.addf %15, %18 : vector<16x256xf32>
    %c0_16 = arith.constant 0 : index
    %c0_17 = arith.constant 0 : index
    %20 = vector.load %arg11[%c0_16, %c0_17] : memref<16x256xf32, #tpu.memory_space<vmem>>, vector<16x256xf32>
    tpu.vector_store %arg11[%c0_16, %c0_17], %19 {strides = array<i32>} : memref<16x256xf32, #tpu.memory_space<vmem>>, vector<16x256xf32>,
    %c3_i32 = arith.constant 3 : i32
    %21 = arith.cmpi eq, %arg1, %c3_i32 : i32
    %22 = arith.extui %21 : i1 to i32
    %c0_i32_18 = arith.constant 0 : i32
    %23 = arith.cmpi ne, %22, %c0_i32_18 : i32
    scf.if %23 {
      %c0_19 = arith.constant 0 : index
      %c0_20 = arith.constant 0 : index
      %24 = vector.load %arg12[%c0_19, %c0_20] : memref<16x1xf32, #tpu.memory_space<vmem>>, vector<16x1xf32>
      %cst_21 = arith.constant 9.765625E-4 : f32
      %25 = vector.broadcast %cst_21 : f32 to vector<16x1xf32>
      %26 = arith.mulf %24, %25 : vector<16x1xf32>
      %c0_22 = arith.constant 0 : index
      %c0_23 = arith.constant 0 : index
      %27 = vector.load %arg13[%c0_22, %c0_23] : memref<16x1xf32, #tpu.memory_space<vmem>>, vector<16x1xf32>
      %cst_24 = arith.constant 9.765625E-4 : f32
      %28 = vector.broadcast %cst_24 : f32 to vector<16x1xf32>
      %29 = arith.mulf %27, %28 : vector<16x1xf32>
      %30 = arith.mulf %26, %26 : vector<16x1xf32>
      %31 = arith.subf %29, %30 : vector<16x1xf32>
      %cst_25 = arith.constant 9.99999974E-6 : f32
      %32 = vector.broadcast %cst_25 : f32 to vector<16x1xf32>
      %33 = arith.addf %31, %32 : vector<16x1xf32>
      %34 = math.rsqrt %33 : vector<16x1xf32>
      %c0_26 = arith.constant 0 : index
      %c0_27 = arith.constant 0 : index
      %35 = vector.load %arg11[%c0_26, %c0_27] : memref<16x256xf32, #tpu.memory_space<vmem>>, vector<16x256xf32>
      %c0_28 = arith.constant 0 : index
      %c0_29 = arith.constant 0 : index
      %36 = vector.load %arg4[%c0_28, %c0_29] : memref<1x256xf32, #tpu.memory_space<vmem>>, vector<1x256xf32>
      %37 = vector.broadcast %26 : vector<16x1xf32> to vector<16x256xf32>
      %38 = vector.broadcast %36 : vector<1x256xf32> to vector<16x256xf32>
      %39 = arith.mulf %37, %38 : vector<16x256xf32>
      %40 = arith.subf %35, %39 : vector<16x256xf32>
      %41 = vector.broadcast %34 : vector<16x1xf32> to vector<16x256xf32>
      %42 = arith.mulf %41, %40 : vector<16x256xf32>
      %c0_30 = arith.constant 0 : index
      %c0_31 = arith.constant 0 : index
      %43 = vector.load %arg5[%c0_30, %c0_31] : memref<1x256xf32, #tpu.memory_space<vmem>>, vector<1x256xf32>
      %44 = vector.broadcast %43 : vector<1x256xf32> to vector<16x256xf32>
      %45 = arith.addf %42, %44 : vector<16x256xf32>
      %cst_32 = arith.constant 0.000000e+00 : f32
      %46 = vector.broadcast %cst_32 : f32 to vector<16x256xf32>
      %47 = arith.maximumf %45, %46 : vector<16x256xf32>
      %48 = arith.truncf %47 : vector<16x256xf32> to vector<16x256xbf16>
      %c0_33 = arith.constant 0 : index
      %c0_34 = arith.constant 0 : index
      %49 = vector.load %arg6[%c0_33, %c0_34] : memref<256x128xbf16, #tpu.memory_space<vmem>>, vector<256x128xbf16>
      %cst_35 = arith.constant dense<0.000000e+00> : vector<16x128xf32>
      %50 = tpu.matmul %48, %49, %cst_35 {dimension_numbers = #tpu.dot_dimension_numbers<[1], [0], [0], [1], [0, 0, 1, 1], [], []>} : vector<16x256xbf16>, vector<256x128xbf16>, vector<16x128xf32> -> vector<16x128xf32>
      %c0_36 = arith.constant 0 : index
      %c0_37 = arith.constant 0 : index
      %51 = vector.load %arg7[%c0_36, %c0_37] : memref<1x128xf32, #tpu.memory_space<vmem>>, vector<1x128xf32>
      %52 = vector.broadcast %51 : vector<1x128xf32> to vector<16x128xf32>
      %53 = arith.addf %50, %52 : vector<16x128xf32>
      %cst_38 = arith.constant 0.000000e+00 : f32
      %54 = vector.broadcast %cst_38 : f32 to vector<16x128xf32>
      %55 = arith.maximumf %53, %54 : vector<16x128xf32>
      %cst_39 = arith.constant dense<0.000000e+00> : vector<16xf32>
      %56 = vector.multi_reduction <add>, %55, %cst_39 [1] : vector<16x128xf32> to vector<16xf32>
      %57 = vector.shape_cast %56 : vector<16xf32> to vector<16x1xf32>
      %cst_40 = arith.constant 1.280000e+02 : f32
      %58 = vector.broadcast %cst_40 : f32 to vector<16x1xf32>
      %59 = arith.divf %57, %58 : vector<16x1xf32>
      %60 = vector.broadcast %59 : vector<16x1xf32> to vector<16x128xf32>
      %61 = arith.subf %55, %60 : vector<16x128xf32>
      %62 = arith.mulf %61, %61 : vector<16x128xf32>
      %cst_41 = arith.constant dense<0.000000e+00> : vector<16xf32>
      %63 = vector.multi_reduction <add>, %62, %cst_41 [1] : vector<16x128xf32> to vector<16xf32>
      %64 = vector.shape_cast %63 : vector<16xf32> to vector<16x1xf32>
      %cst_42 = arith.constant 1.280000e+02 : f32
      %65 = vector.broadcast %cst_42 : f32 to vector<16x1xf32>
      %66 = arith.divf %64, %65 : vector<16x1xf32>
      %cst_43 = arith.constant 9.99999974E-6 : f32
      %67 = vector.broadcast %cst_43 : f32 to vector<16x1xf32>
      %68 = arith.addf %66, %67 : vector<16x1xf32>
      %69 = math.rsqrt %68 : vector<16x1xf32>
      %70 = vector.broadcast %69 : vector<16x1xf32> to vector<16x128xf32>
      %71 = arith.mulf %61, %70 : vector<16x128xf32>
      %c0_44 = arith.constant 0 : index
      %c0_45 = arith.constant 0 : index
      %72 = vector.load %arg8[%c0_44, %c0_45] : memref<1x128xf32, #tpu.memory_space<vmem>>, vector<1x128xf32>
      %73 = vector.broadcast %72 : vector<1x128xf32> to vector<16x128xf32>
      %74 = arith.mulf %71, %73 : vector<16x128xf32>
      %c0_46 = arith.constant 0 : index
      %c0_47 = arith.constant 0 : index
      %75 = vector.load %arg9[%c0_46, %c0_47] : memref<1x128xf32, #tpu.memory_space<vmem>>, vector<1x128xf32>
      %76 = vector.broadcast %75 : vector<1x128xf32> to vector<16x128xf32>
      %77 = arith.addf %74, %76 : vector<16x128xf32>
      %c0_48 = arith.constant 0 : index
      %c0_49 = arith.constant 0 : index
      %78 = vector.load %arg10[%c0_48, %c0_49] : memref<16x128xf32, #tpu.memory_space<vmem>>, vector<16x128xf32>
      tpu.vector_store %arg10[%c0_48, %c0_49], %77 {strides = array<i32>} : memref<16x128xf32, #tpu.memory_space<vmem>>, vector<16x128xf32>,
    } else {
    }
    return
  }
  func.func @transform_0(%arg0: i32, %arg1: i32) -> (i32, i32) {
    %c0_i32 = arith.constant 0 : i32
    return %arg0, %arg1 : i32, i32
  }
  func.func @transform_1(%arg0: i32, %arg1: i32) -> (i32, i32) {
    %c0_i32 = arith.constant 0 : i32
    %c0_i32_0 = arith.constant 0 : i32
    return %arg1, %c0_i32 : i32, i32
  }
  func.func @transform_2(%arg0: i32, %arg1: i32) -> (i32, i32) {
    %c0_i32 = arith.constant 0 : i32
    %c0_i32_0 = arith.constant 0 : i32
    %c0_i32_1 = arith.constant 0 : i32
    return %c0_i32, %c0_i32_0 : i32, i32
  }
  func.func @transform_3(%arg0: i32, %arg1: i32) -> (i32, i32) {
    %c0_i32 = arith.constant 0 : i32
    %c0_i32_0 = arith.constant 0 : i32
    %c0_i32_1 = arith.constant 0 : i32
    return %c0_i32, %c0_i32_0 : i32, i32
  }
  func.func @transform_4(%arg0: i32, %arg1: i32) -> (i32, i32) {
    %c0_i32 = arith.constant 0 : i32
    %c0_i32_0 = arith.constant 0 : i32
    %c0_i32_1 = arith.constant 0 : i32
    return %c0_i32, %c0_i32_0 : i32, i32
  }
  func.func @transform_5(%arg0: i32, %arg1: i32) -> (i32, i32) {
    %c0_i32 = arith.constant 0 : i32
    %c0_i32_0 = arith.constant 0 : i32
    %c0_i32_1 = arith.constant 0 : i32
    return %c0_i32, %c0_i32_0 : i32, i32
  }
  func.func @transform_6(%arg0: i32, %arg1: i32) -> (i32, i32) {
    %c0_i32 = arith.constant 0 : i32
    %c0_i32_0 = arith.constant 0 : i32
    %c0_i32_1 = arith.constant 0 : i32
    return %c0_i32, %c0_i32_0 : i32, i32
  }
  func.func @transform_7(%arg0: i32, %arg1: i32) -> (i32, i32) {
    %c0_i32 = arith.constant 0 : i32
    %c0_i32_0 = arith.constant 0 : i32
    %c0_i32_1 = arith.constant 0 : i32
    return %c0_i32, %c0_i32_0 : i32, i32
  }
  func.func @transform_8(%arg0: i32, %arg1: i32) -> (i32, i32) {
    %c0_i32 = arith.constant 0 : i32
    %c0_i32_0 = arith.constant 0 : i32
    return %arg0, %c0_i32 : i32, i32
  }
}

module attributes {stable_mosaic.version = 11 : i64} {
  func.func @_head_kernel(%arg0: i32, %arg1: i32, %arg2: memref<16x256xf32, #tpu.memory_space<vmem>>, %arg3: memref<256x256xbf16, #tpu.memory_space<vmem>>, %arg4: memref<1x256xf32, #tpu.memory_space<vmem>>, %arg5: memref<1x256xf32, #tpu.memory_space<vmem>>, %arg6: memref<256x128xbf16, #tpu.memory_space<vmem>>, %arg7: memref<1x128xf32, #tpu.memory_space<vmem>>, %arg8: memref<1x128xf32, #tpu.memory_space<vmem>>, %arg9: memref<1x128xf32, #tpu.memory_space<vmem>>, %arg10: memref<16x128xf32, #tpu.memory_space<vmem>>, %arg11: memref<16x256xf32, #tpu.memory_space<vmem>>, %arg12: memref<16x1xf32, #tpu.memory_space<vmem>>, %arg13: memref<16x1xf32, #tpu.memory_space<vmem>>) attributes {dimension_semantics = [#tpu.dimension_semantics<parallel>, #tpu.dimension_semantics<arbitrary>], iteration_bounds = array<i64: 2, 4>, scalar_prefetch = 0 : i64, scratch_operands = 3 : i64, tpu.core_type = #tpu.core_type<tc>, window_params = [{transform_indices = @transform_0, window_bounds = array<i64: 16, 256>}, {transform_indices = @transform_1, window_bounds = array<i64: 256, 256>}, {pipeline_mode = #tpu.pipeline_mode<synchronous>, transform_indices = @transform_2, window_bounds = array<i64: 1, 256>}, {pipeline_mode = #tpu.pipeline_mode<synchronous>, transform_indices = @transform_3, window_bounds = array<i64: 1, 256>}, {pipeline_mode = #tpu.pipeline_mode<synchronous>, transform_indices = @transform_4, window_bounds = array<i64: 256, 128>}, {pipeline_mode = #tpu.pipeline_mode<synchronous>, transform_indices = @transform_5, window_bounds = array<i64: 1, 128>}, {pipeline_mode = #tpu.pipeline_mode<synchronous>, transform_indices = @transform_6, window_bounds = array<i64: 1, 128>}, {pipeline_mode = #tpu.pipeline_mode<synchronous>, transform_indices = @transform_7, window_bounds = array<i64: 1, 128>}, {transform_indices = @transform_8, window_bounds = array<i64: 16, 128>}]} {
    %c0_i32 = arith.constant 0 : i32
    %0 = arith.cmpi eq, %arg1, %c0_i32 : i32
    %1 = arith.extui %0 : i1 to i32
    %c0_i32_0 = arith.constant 0 : i32
    %2 = arith.cmpi ne, %1, %c0_i32_0 : i32
    scf.if %2 {
      %cst_19 = arith.constant 0.000000e+00 : f32
      %24 = vector.broadcast %cst_19 : f32 to vector<16x256xf32>
      %c0_20 = arith.constant 0 : index
      %c0_21 = arith.constant 0 : index
      %25 = vector.load %arg11[%c0_20, %c0_21] : memref<16x256xf32, #tpu.memory_space<vmem>>, vector<16x256xf32>
      tpu.vector_store %arg11[%c0_20, %c0_21], %24 {strides = array<i32>} : memref<16x256xf32, #tpu.memory_space<vmem>>, vector<16x256xf32>,
      %cst_22 = arith.constant 0.000000e+00 : f32
      %26 = vector.broadcast %cst_22 : f32 to vector<16x1xf32>
      %c0_23 = arith.constant 0 : index
      %c0_24 = arith.constant 0 : index
      %27 = vector.load %arg12[%c0_23, %c0_24] : memref<16x1xf32, #tpu.memory_space<vmem>>, vector<16x1xf32>
      tpu.vector_store %arg12[%c0_23, %c0_24], %26 {strides = array<i32>} : memref<16x1xf32, #tpu.memory_space<vmem>>, vector<16x1xf32>,
      %cst_25 = arith.constant 0.000000e+00 : f32
      %28 = vector.broadcast %cst_25 : f32 to vector<16x1xf32>
      %c0_26 = arith.constant 0 : index
      %c0_27 = arith.constant 0 : index
      %29 = vector.load %arg13[%c0_26, %c0_27] : memref<16x1xf32, #tpu.memory_space<vmem>>, vector<16x1xf32>
      tpu.vector_store %arg13[%c0_26, %c0_27], %28 {strides = array<i32>} : memref<16x1xf32, #tpu.memory_space<vmem>>, vector<16x1xf32>,
    } else {
    }
    %c0 = arith.constant 0 : index
    %c0_1 = arith.constant 0 : index
    %3 = vector.load %arg2[%c0, %c0_1] : memref<16x256xf32, #tpu.memory_space<vmem>>, vector<16x256xf32>
    %c0_2 = arith.constant 0 : index
    %c0_3 = arith.constant 0 : index
    %4 = vector.load %arg12[%c0_2, %c0_3] : memref<16x1xf32, #tpu.memory_space<vmem>>, vector<16x1xf32>
    %cst = arith.constant dense<0.000000e+00> : vector<16xf32>
    %5 = vector.multi_reduction <add>, %3, %cst [1] : vector<16x256xf32> to vector<16xf32>
    %6 = vector.shape_cast %5 : vector<16xf32> to vector<16x1xf32>
    %7 = arith.addf %4, %6 : vector<16x1xf32>
    %c0_4 = arith.constant 0 : index
    %c0_5 = arith.constant 0 : index
    %8 = vector.load %arg12[%c0_4, %c0_5] : memref<16x1xf32, #tpu.memory_space<vmem>>, vector<16x1xf32>
    tpu.vector_store %arg12[%c0_4, %c0_5], %7 {strides = array<i32>} : memref<16x1xf32, #tpu.memory_space<vmem>>, vector<16x1xf32>,
    %c0_6 = arith.constant 0 : index
    %c0_7 = arith.constant 0 : index
    %9 = vector.load %arg13[%c0_6, %c0_7] : memref<16x1xf32, #tpu.memory_space<vmem>>, vector<16x1xf32>
    %10 = arith.mulf %3, %3 : vector<16x256xf32>
    %cst_8 = arith.constant dense<0.000000e+00> : vector<16xf32>
    %11 = vector.multi_reduction <add>, %10, %cst_8 [1] : vector<16x256xf32> to vector<16xf32>
    %12 = vector.shape_cast %11 : vector<16xf32> to vector<16x1xf32>
    %13 = arith.addf %9, %12 : vector<16x1xf32>
    %c0_9 = arith.constant 0 : index
    %c0_10 = arith.constant 0 : index
    %14 = vector.load %arg13[%c0_9, %c0_10] : memref<16x1xf32, #tpu.memory_space<vmem>>, vector<16x1xf32>
    tpu.vector_store %arg13[%c0_9, %c0_10], %13 {strides = array<i32>} : memref<16x1xf32, #tpu.memory_space<vmem>>, vector<16x1xf32>,
    %c0_11 = arith.constant 0 : index
    %c0_12 = arith.constant 0 : index
    %15 = vector.load %arg11[%c0_11, %c0_12] : memref<16x256xf32, #tpu.memory_space<vmem>>, vector<16x256xf32>
    %16 = arith.truncf %3 : vector<16x256xf32> to vector<16x256xbf16>
    %c0_13 = arith.constant 0 : index
    %c0_14 = arith.constant 0 : index
    %17 = vector.load %arg3[%c0_13, %c0_14] : memref<256x256xbf16, #tpu.memory_space<vmem>>, vector<256x256xbf16>
    %cst_15 = arith.constant dense<0.000000e+00> : vector<16x256xf32>
    %18 = tpu.matmul %16, %17, %cst_15 {dimension_numbers = #tpu.dot_dimension_numbers<[1], [0], [0], [1], [0, 0, 1, 1], [], []>} : vector<16x256xbf16>, vector<256x256xbf16>, vector<16x256xf32> -> vector<16x256xf32>
    %19 = arith.addf %15, %18 : vector<16x256xf32>
    %c0_16 = arith.constant 0 : index
    %c0_17 = arith.constant 0 : index
    %20 = vector.load %arg11[%c0_16, %c0_17] : memref<16x256xf32, #tpu.memory_space<vmem>>, vector<16x256xf32>
    tpu.vector_store %arg11[%c0_16, %c0_17], %19 {strides = array<i32>} : memref<16x256xf32, #tpu.memory_space<vmem>>, vector<16x256xf32>,
    %c3_i32 = arith.constant 3 : i32
    %21 = arith.cmpi eq, %arg1, %c3_i32 : i32
    %22 = arith.extui %21 : i1 to i32
    %c0_i32_18 = arith.constant 0 : i32
    %23 = arith.cmpi ne, %22, %c0_i32_18 : i32
    scf.if %23 {
      %c0_19 = arith.constant 0 : index
      %c0_20 = arith.constant 0 : index
      %24 = vector.load %arg12[%c0_19, %c0_20] : memref<16x1xf32, #tpu.memory_space<vmem>>, vector<16x1xf32>
      %cst_21 = arith.constant 9.765625E-4 : f32
      %25 = vector.broadcast %cst_21 : f32 to vector<16x1xf32>
      %26 = arith.mulf %24, %25 : vector<16x1xf32>
      %c0_22 = arith.constant 0 : index
      %c0_23 = arith.constant 0 : index
      %27 = vector.load %arg13[%c0_22, %c0_23] : memref<16x1xf32, #tpu.memory_space<vmem>>, vector<16x1xf32>
      %cst_24 = arith.constant 9.765625E-4 : f32
      %28 = vector.broadcast %cst_24 : f32 to vector<16x1xf32>
      %29 = arith.mulf %27, %28 : vector<16x1xf32>
      %30 = arith.mulf %26, %26 : vector<16x1xf32>
      %31 = arith.subf %29, %30 : vector<16x1xf32>
      %cst_25 = arith.constant 9.99999974E-6 : f32
      %32 = vector.broadcast %cst_25 : f32 to vector<16x1xf32>
      %33 = arith.addf %31, %32 : vector<16x1xf32>
      %34 = math.rsqrt %33 : vector<16x1xf32>
      %c0_26 = arith.constant 0 : index
      %c0_27 = arith.constant 0 : index
      %35 = vector.load %arg11[%c0_26, %c0_27] : memref<16x256xf32, #tpu.memory_space<vmem>>, vector<16x256xf32>
      %c0_28 = arith.constant 0 : index
      %c0_29 = arith.constant 0 : index
      %36 = vector.load %arg4[%c0_28, %c0_29] : memref<1x256xf32, #tpu.memory_space<vmem>>, vector<1x256xf32>
      %37 = vector.broadcast %26 : vector<16x1xf32> to vector<16x256xf32>
      %38 = vector.broadcast %36 : vector<1x256xf32> to vector<16x256xf32>
      %39 = arith.mulf %37, %38 : vector<16x256xf32>
      %40 = arith.subf %35, %39 : vector<16x256xf32>
      %41 = vector.broadcast %34 : vector<16x1xf32> to vector<16x256xf32>
      %42 = arith.mulf %41, %40 : vector<16x256xf32>
      %c0_30 = arith.constant 0 : index
      %c0_31 = arith.constant 0 : index
      %43 = vector.load %arg5[%c0_30, %c0_31] : memref<1x256xf32, #tpu.memory_space<vmem>>, vector<1x256xf32>
      %44 = vector.broadcast %43 : vector<1x256xf32> to vector<16x256xf32>
      %45 = arith.addf %42, %44 : vector<16x256xf32>
      %cst_32 = arith.constant 0.000000e+00 : f32
      %46 = vector.broadcast %cst_32 : f32 to vector<16x256xf32>
      %47 = arith.maximumf %45, %46 : vector<16x256xf32>
      %48 = arith.truncf %47 : vector<16x256xf32> to vector<16x256xbf16>
      %c0_33 = arith.constant 0 : index
      %c0_34 = arith.constant 0 : index
      %49 = vector.load %arg6[%c0_33, %c0_34] : memref<256x128xbf16, #tpu.memory_space<vmem>>, vector<256x128xbf16>
      %cst_35 = arith.constant dense<0.000000e+00> : vector<16x128xf32>
      %50 = tpu.matmul %48, %49, %cst_35 {dimension_numbers = #tpu.dot_dimension_numbers<[1], [0], [0], [1], [0, 0, 1, 1], [], []>} : vector<16x256xbf16>, vector<256x128xbf16>, vector<16x128xf32> -> vector<16x128xf32>
      %c0_36 = arith.constant 0 : index
      %c0_37 = arith.constant 0 : index
      %51 = vector.load %arg7[%c0_36, %c0_37] : memref<1x128xf32, #tpu.memory_space<vmem>>, vector<1x128xf32>
      %52 = vector.broadcast %51 : vector<1x128xf32> to vector<16x128xf32>
      %53 = arith.addf %50, %52 : vector<16x128xf32>
      %cst_38 = arith.constant 0.000000e+00 : f32
      %54 = vector.broadcast %cst_38 : f32 to vector<16x128xf32>
      %55 = arith.maximumf %53, %54 : vector<16x128xf32>
      %cst_39 = arith.constant dense<0.000000e+00> : vector<16xf32>
      %56 = vector.multi_reduction <add>, %55, %cst_39 [1] : vector<16x128xf32> to vector<16xf32>
      %57 = vector.shape_cast %56 : vector<16xf32> to vector<16x1xf32>
      %cst_40 = arith.constant 1.280000e+02 : f32
      %58 = vector.broadcast %cst_40 : f32 to vector<16x1xf32>
      %59 = arith.divf %57, %58 : vector<16x1xf32>
      %60 = vector.broadcast %59 : vector<16x1xf32> to vector<16x128xf32>
      %61 = arith.subf %55, %60 : vector<16x128xf32>
      %62 = arith.mulf %61, %61 : vector<16x128xf32>
      %cst_41 = arith.constant dense<0.000000e+00> : vector<16xf32>
      %63 = vector.multi_reduction <add>, %62, %cst_41 [1] : vector<16x128xf32> to vector<16xf32>
      %64 = vector.shape_cast %63 : vector<16xf32> to vector<16x1xf32>
      %cst_42 = arith.constant 1.280000e+02 : f32
      %65 = vector.broadcast %cst_42 : f32 to vector<16x1xf32>
      %66 = arith.divf %64, %65 : vector<16x1xf32>
      %cst_43 = arith.constant 9.99999974E-6 : f32
      %67 = vector.broadcast %cst_43 : f32 to vector<16x1xf32>
      %68 = arith.addf %66, %67 : vector<16x1xf32>
      %69 = math.rsqrt %68 : vector<16x1xf32>
      %70 = vector.broadcast %69 : vector<16x1xf32> to vector<16x128xf32>
      %71 = arith.mulf %61, %70 : vector<16x128xf32>
      %c0_44 = arith.constant 0 : index
      %c0_45 = arith.constant 0 : index
      %72 = vector.load %arg8[%c0_44, %c0_45] : memref<1x128xf32, #tpu.memory_space<vmem>>, vector<1x128xf32>
      %73 = vector.broadcast %72 : vector<1x128xf32> to vector<16x128xf32>
      %74 = arith.mulf %71, %73 : vector<16x128xf32>
      %c0_46 = arith.constant 0 : index
      %c0_47 = arith.constant 0 : index
      %75 = vector.load %arg9[%c0_46, %c0_47] : memref<1x128xf32, #tpu.memory_space<vmem>>, vector<1x128xf32>
      %76 = vector.broadcast %75 : vector<1x128xf32> to vector<16x128xf32>
      %77 = arith.addf %74, %76 : vector<16x128xf32>
      %c0_48 = arith.constant 0 : index
      %c0_49 = arith.constant 0 : index
      %78 = vector.load %arg10[%c0_48, %c0_49] : memref<16x128xf32, #tpu.memory_space<vmem>>, vector<16x128xf32>
      tpu.vector_store %arg10[%c0_48, %c0_49], %77 {strides = array<i32>} : memref<16x128xf32, #tpu.memory_space<vmem>>, vector<16x128xf32>,
    } else {
    }
    return
  }
  func.func @transform_0(%arg0: i32, %arg1: i32) -> (i32, i32) {
    %c0_i32 = arith.constant 0 : i32
    return %arg0, %arg1 : i32, i32
  }
  func.func @transform_1(%arg0: i32, %arg1: i32) -> (i32, i32) {
    %c0_i32 = arith.constant 0 : i32
    %c0_i32_0 = arith.constant 0 : i32
    return %arg1, %c0_i32 : i32, i32
  }
  func.func @transform_2(%arg0: i32, %arg1: i32) -> (i32, i32) {
    %c0_i32 = arith.constant 0 : i32
    %c0_i32_0 = arith.constant 0 : i32
    %c0_i32_1 = arith.constant 0 : i32
    return %c0_i32, %c0_i32_0 : i32, i32
  }
  func.func @transform_3(%arg0: i32, %arg1: i32) -> (i32, i32) {
    %c0_i32 = arith.constant 0 : i32
    %c0_i32_0 = arith.constant 0 : i32
    %c0_i32_1 = arith.constant 0 : i32
    return %c0_i32, %c0_i32_0 : i32, i32
  }
  func.func @transform_4(%arg0: i32, %arg1: i32) -> (i32, i32) {
    %c0_i32 = arith.constant 0 : i32
    %c0_i32_0 = arith.constant 0 : i32
    %c0_i32_1 = arith.constant 0 : i32
    return %c0_i32, %c0_i32_0 : i32, i32
  }
  func.func @transform_5(%arg0: i32, %arg1: i32) -> (i32, i32) {
    %c0_i32 = arith.constant 0 : i32
    %c0_i32_0 = arith.constant 0 : i32
    %c0_i32_1 = arith.constant 0 : i32
    return %c0_i32, %c0_i32_0 : i32, i32
  }
  func.func @transform_6(%arg0: i32, %arg1: i32) -> (i32, i32) {
    %c0_i32 = arith.constant 0 : i32
    %c0_i32_0 = arith.constant 0 : i32
    %c0_i32_1 = arith.constant 0 : i32
    return %c0_i32, %c0_i32_0 : i32, i32
  }
  func.func @transform_7(%arg0: i32, %arg1: i32) -> (i32, i32) {
    %c0_i32 = arith.constant 0 : i32
    %c0_i32_0 = arith.constant 0 : i32
    %c0_i32_1 = arith.constant 0 : i32
    return %c0_i32, %c0_i32_0 : i32, i32
  }
  func.func @transform_8(%arg0: i32, %arg1: i32) -> (i32, i32) {
    %c0_i32 = arith.constant 0 : i32
    %c0_i32_0 = arith.constant 0 : i32
    return %arg0, %c0_i32 : i32, i32
  }
}

</mosaic_0001>

<llo_original>
// kernel: tpu_custom_call.1
$region0: #{tpu_custom_call.1}
  #allocation0 [shape = 'u32[]', space=smem, size = 0x4, offset = 0x4, fixed_abs, tag = 'smem constant byte address 0x4 - core index']
  #allocation1 [shape = 'u32[144,128]{1,0:T(1,128)}', space=vmem, size = 0x12000, scoped, tag = 'internal scratch']
  #allocation2 [shape = 'f32[16,256]{1,0:T(8,128)}', space=vmem, size = 0x4000, scoped, tag = 'scratch operand']
  #allocation3 [shape = 'f32[16,1]{1,0:T(8,128)}', space=vmem, size = 0x2000, scoped, tag = 'scratch operand']
  #allocation4 [shape = 'f32[16,1]{1,0:T(8,128)}', space=vmem, size = 0x2000, scoped, tag = 'scratch operand']
  %s0 = inlined_call_operand.hbm [shape: f32[32,1024], index: 0, kind: input, shape index: {}]
  %s1 = inlined_call_operand.hbm [shape: bf16[1024,256], index: 1, kind: input, shape index: {}]
  %s2 = inlined_call_operand.vmem [shape: f32[1,256], index: 2, kind: input, shape index: {}]
  %s3 = inlined_call_operand.vmem [shape: f32[1,256], index: 3, kind: input, shape index: {}]
  %s4 = inlined_call_operand.hbm [shape: bf16[256,128], index: 4, kind: input, shape index: {}]
  %s5 = inlined_call_operand.vmem [shape: f32[1,128], index: 5, kind: input, shape index: {}]
  %s6 = inlined_call_operand.vmem [shape: f32[1,128], index: 6, kind: input, shape index: {}]
  %s7 = inlined_call_operand.vmem [shape: f32[1,128], index: 7, kind: input, shape index: {}]
  %s8 = inlined_call_operand.hbm [shape: f32[32,128], index: 8, kind: output, shape index: {}]
  %s9 = sld [smem:[#allocation0]]
  $region85: #{tpu_custom_call.1} parent=0
    _
  %s11 = ssub.s32 1, %s9
  %s12 = scalar_select 0, %s11, %s9
  $region1: #{tpu_custom_call.1} parent=0
    #allocation5 [shape = 'u8[32768]{0}', space=vmem, size = 0x8000, scoped, tag = 'input window, operand 0']
    #allocation6 [shape = 's32[2]{0}', space=sflag, size = 0x8, scoped, tag = 'scoped memory for tpu_custom_call.1']
    #allocation7 [shape = 's32[2]{0}', space=sflag, size = 0x8, scoped, tag = 'scoped memory for tpu_custom_call.1']
    #allocation8 [shape = 'u8[262144]{0}', space=vmem, size = 0x40000, scoped, tag = 'input window, operand 1']
    #allocation9 [shape = 's32[2]{0}', space=sflag, size = 0x8, scoped, tag = 'scoped memory for tpu_custom_call.1']
    #allocation10 [shape = 'u8[65536]{0}', space=vmem, size = 0x10000, scoped, tag = 'input window, operand 4, single buffered']
    #allocation11 [shape = 'u8[16384]{0}', space=vmem, size = 0x4000, scoped, tag = 'output window, operand 0']
    %13 = vsyncpa [#allocation6], 0
    %s14 = scalar_lea.sflag [#allocation6], 1
    %15 = vsyncpa %s14, 0
    %16 = vsyncpa [#allocation9], 0
    %s17 = scalar_lea.sflag [#allocation9], 1
    %18 = vsyncpa %s17, 0
    %19 = vsyncpa [#allocation7], 0
    %s20 = scalar_lea.sflag [#allocation7], 1
    %21 = vsyncpa %s20, 0
    loop: start=0, step=1, limit=10
    $region2: #{tpu_custom_call.1} parent=1 // loop_pre_header
      _
    $region3: #{tpu_custom_call.1} parent=1 // loop_header
      %s23 = sphi 0, %s27
      %p24 = scmp.ge.s32.totalorder %s23, 10
      %s30 = sphi 0, %s42
      %s31 = sphi 0, %s38
      %s32 = sphi 0, %s30
      %s33 = sphi 0, %s31
      %s34 = sphi 0, %s32
      %s35 = sphi 0, %s33
      %s47 = sphi 0, %s49
      %s50 = sphi 0, %s47
      %s51 = sphi 0, %s50
      %s67 = sphi 0, %s51
      %s73 = sphi 0, %s75
      %s76 = sphi 0, %s73
      %s77 = sphi 0, %s76
      %s93 = sphi 0, %s77
      %s97 = sphi 0, %s97
      %s99 = sphi 0, %s97
      %s100 = sphi 0, %s99
      %s114 = sphi 0, %s100
      %s118 = sphi 0, %s118
      %s120 = sphi 0, %s118
      %s121 = sphi 0, %s120
      %s135 = sphi 0, %s121
      %s139 = sphi 0, %s139
      %s141 = sphi 0, %s139
      %s142 = sphi 0, %s141
      %s156 = sphi 0, %s142
      %s160 = sphi 0, %s160
      %s162 = sphi 0, %s160
      %s163 = sphi 0, %s162
      %s177 = sphi 0, %s163
      %s181 = sphi 0, %s181
      %s183 = sphi 0, %s181
      %s184 = sphi 0, %s183
      %s198 = sphi 0, %s184
      %s202 = sphi 0, %s202
      %s204 = sphi 0, %s202
      %s205 = sphi 0, %s204
      %s219 = sphi 0, %s205
      %s225 = sphi 0, %s227
      %s228 = sphi 0, %s225
      %s229 = sphi 0, %s228
      %s245 = sphi 0, %s229
    $region4: #{tpu_custom_call.1} parent=1 // loop_header_branch
      %26 = sbr.rel (%p24) target = $region8
    $region5: #{tpu_custom_call.1} parent=1 // loop_body
      %s28 = ssub.s32 %s23, 1
      %s29 = ssub.s32 %s23, 2
      %s36 = sadd.s32 1, %s31
      %p37 = scmp.ge.s32.totalorder %s36, 4
      %s38 = scalar_select %p37, 0, %s36
      %s39 = sadd.s32 1, %s30
      %s40 = scalar_select %p37, %s39, %s30
      %p41 = scmp.ge.s32.totalorder %s40, 2
      %s42 = scalar_select %p41, 0, %s40
      %s43 = ssub.s32 %s30, %s42
      %s44 = ssub.s32 %s31, %s38
      %s45 = sor.u32 %s43, %s44
      %p46 = scmp.eq.s32.totalorder %s45, 0
      %s48 = sadd.s32 %s47, 1
      %s49 = scalar_select %p46, %s47, %s48
      %p52 = pneg %p46
      %p53 = scmp.eq.s32.totalorder %s23, 7
      %p54 = por %p52, %p53
      %p55 = scmp.ne.s32.totalorder %s47, %s50
      %p56 = scmp.eq.s32.totalorder %s23, 0
      %p57 = por %p55, %p56
      %p58 = scmp.ne.s32.totalorder %s47, %s50
      %p59 = scmp.eq.s32.totalorder %s28, 7
      %p60 = por %p58, %p59
      %p61 = scmp.ne.s32.totalorder %s50, %s51
      %p62 = scmp.eq.s32.totalorder %s28, 0
      %p63 = por %p61, %p62
      %p64 = scmp.ne.s32.totalorder %s50, %s51
      %p65 = scmp.eq.s32.totalorder %s29, 7
      %p66 = por %p64, %p65
      %p68 = scmp.ne.s32.totalorder %s51, %s67
      %p69 = scmp.eq.s32.totalorder %s29, 0
      %p70 = por %p68, %p69
      %s71 = ssub.s32 %s31, %s38
      %p72 = scmp.eq.s32.totalorder %s71, 0
      %s74 = sadd.s32 %s73, 1
      %s75 = scalar_select %p72, %s73, %s74
      %p78 = pneg %p72
      %p79 = scmp.eq.s32.totalorder %s23, 7
      %p80 = por %p78, %p79
      %p81 = scmp.ne.s32.totalorder %s73, %s76
      %p82 = scmp.eq.s32.totalorder %s23, 0
      %p83 = por %p81, %p82
      %p84 = scmp.ne.s32.totalorder %s73, %s76
      %p85 = scmp.eq.s32.totalorder %s28, 7
      %p86 = por %p84, %p85
      %p87 = scmp.ne.s32.totalorder %s76, %s77
      %p88 = scmp.eq.s32.totalorder %s28, 0
      %p89 = por %p87, %p88
      %p90 = scmp.ne.s32.totalorder %s76, %s77
      %p91 = scmp.eq.s32.totalorder %s29, 7
      %p92 = por %p90, %p91
      %p94 = scmp.ne.s32.totalorder %s77, %s93
      %p95 = scmp.eq.s32.totalorder %s29, 0
      %p96 = por %p94, %p95
      %s98 = sadd.s32 %s97, 1
      %p101 = scmp.eq.s32.totalorder %s23, 7
      %p102 = scmp.ne.s32.totalorder %s97, %s99
      %p103 = scmp.eq.s32.totalorder %s23, 0
      %p104 = por %p102, %p103
      %p105 = scmp.ne.s32.totalorder %s97, %s99
      %p106 = scmp.eq.s32.totalorder %s28, 7
      %p107 = por %p105, %p106
      %p108 = scmp.ne.s32.totalorder %s99, %s100
      %p109 = scmp.eq.s32.totalorder %s28, 0
      %p110 = por %p108, %p109
      %p111 = scmp.ne.s32.totalorder %s99, %s100
      %p112 = scmp.eq.s32.totalorder %s29, 7
      %p113 = por %p111, %p112
      %p115 = scmp.ne.s32.totalorder %s100, %s114
      %p116 = scmp.eq.s32.totalorder %s29, 0
      %p117 = por %p115, %p116
      %s119 = sadd.s32 %s118, 1
      %p122 = scmp.eq.s32.totalorder %s23, 7
      %p123 = scmp.ne.s32.totalorder %s118, %s120
      %p124 = scmp.eq.s32.totalorder %s23, 0
      %p125 = por %p123, %p124
      %p126 = scmp.ne.s32.totalorder %s118, %s120
      %p127 = scmp.eq.s32.totalorder %s28, 7
      %p128 = por %p126, %p127
      %p129 = scmp.ne.s32.totalorder %s120, %s121
      %p130 = scmp.eq.s32.totalorder %s28, 0
      %p131 = por %p129, %p130
      %p132 = scmp.ne.s32.totalorder %s120, %s121
      %p133 = scmp.eq.s32.totalorder %s29, 7
      %p134 = por %p132, %p133
      %p136 = scmp.ne.s32.totalorder %s121, %s135
      %p137 = scmp.eq.s32.totalorder %s29, 0
      %p138 = por %p136, %p137
      %s140 = sadd.s32 %s139, 1
      %p143 = scmp.eq.s32.totalorder %s23, 7
      %p144 = scmp.ne.s32.totalorder %s139, %s141
      %p145 = scmp.eq.s32.totalorder %s23, 0
      %p146 = por %p144, %p145
      %p147 = scmp.ne.s32.totalorder %s139, %s141
      %p148 = scmp.eq.s32.totalorder %s28, 7
      %p149 = por %p147, %p148
      %p150 = scmp.ne.s32.totalorder %s141, %s142
      %p151 = scmp.eq.s32.totalorder %s28, 0
      %p152 = por %p150, %p151
      %p153 = scmp.ne.s32.totalorder %s141, %s142
      %p154 = scmp.eq.s32.totalorder %s29, 7
      %p155 = por %p153, %p154
      %p157 = scmp.ne.s32.totalorder %s142, %s156
      %p158 = scmp.eq.s32.totalorder %s29, 0
      %p159 = por %p157, %p158
      %s161 = sadd.s32 %s160, 1
      %p164 = scmp.eq.s32.totalorder %s23, 7
      %p165 = scmp.ne.s32.totalorder %s160, %s162
      %p166 = scmp.eq.s32.totalorder %s23, 0
      %p167 = por %p165, %p166
      %p168 = scmp.ne.s32.totalorder %s160, %s162
      %p169 = scmp.eq.s32.totalorder %s28, 7
      %p170 = por %p168, %p169
      %p171 = scmp.ne.s32.totalorder %s162, %s163
      %p172 = scmp.eq.s32.totalorder %s28, 0
      %p173 = por %p171, %p172
      %p174 = scmp.ne.s32.totalorder %s162, %s163
      %p175 = scmp.eq.s32.totalorder %s29, 7
      %p176 = por %p174, %p175
      %p178 = scmp.ne.s32.totalorder %s163, %s177
      %p179 = scmp.eq.s32.totalorder %s29, 0
      %p180 = por %p178, %p179
      %s182 = sadd.s32 %s181, 1
      %p185 = scmp.eq.s32.totalorder %s23, 7
      %p186 = scmp.ne.s32.totalorder %s181, %s183
      %p187 = scmp.eq.s32.totalorder %s23, 0
      %p188 = por %p186, %p187
      %p189 = scmp.ne.s32.totalorder %s181, %s183
      %p190 = scmp.eq.s32.totalorder %s28, 7
      %p191 = por %p189, %p190
      %p192 = scmp.ne.s32.totalorder %s183, %s184
      %p193 = scmp.eq.s32.totalorder %s28, 0
      %p194 = por %p192, %p193
      %p195 = scmp.ne.s32.totalorder %s183, %s184
      %p196 = scmp.eq.s32.totalorder %s29, 7
      %p197 = por %p195, %p196
      %p199 = scmp.ne.s32.totalorder %s184, %s198
      %p200 = scmp.eq.s32.totalorder %s29, 0
      %p201 = por %p199, %p200
      %s203 = sadd.s32 %s202, 1
      %p206 = scmp.eq.s32.totalorder %s23, 7
      %p207 = scmp.ne.s32.totalorder %s202, %s204
      %p208 = scmp.eq.s32.totalorder %s23, 0
      %p209 = por %p207, %p208
      %p210 = scmp.ne.s32.totalorder %s202, %s204
      %p211 = scmp.eq.s32.totalorder %s28, 7
      %p212 = por %p210, %p211
      %p213 = scmp.ne.s32.totalorder %s204, %s205
      %p214 = scmp.eq.s32.totalorder %s28, 0
      %p215 = por %p213, %p214
      %p216 = scmp.ne.s32.totalorder %s204, %s205
      %p217 = scmp.eq.s32.totalorder %s29, 7
      %p218 = por %p216, %p217
      %p220 = scmp.ne.s32.totalorder %s205, %s219
      %p221 = scmp.eq.s32.totalorder %s29, 0
      %p222 = por %p220, %p221
      %s223 = ssub.s32 %s30, %s42
      %p224 = scmp.eq.s32.totalorder %s223, 0
      %s226 = sadd.s32 %s225, 1
      %s227 = scalar_select %p224, %s225, %s226
      %p230 = pneg %p224
      %p231 = scmp.eq.s32.totalorder %s23, 7
      %p232 = por %p230, %p231
      %p233 = scmp.ne.s32.totalorder %s225, %s228
      %p234 = scmp.eq.s32.totalorder %s23, 0
      %p235 = por %p233, %p234
      %p236 = scmp.ne.s32.totalorder %s225, %s228
      %p237 = scmp.eq.s32.totalorder %s28, 7
      %p238 = por %p236, %p237
      %p239 = scmp.ne.s32.totalorder %s228, %s229
      %p240 = scmp.eq.s32.totalorder %s28, 0
      %p241 = por %p239, %p240
      %p242 = scmp.ne.s32.totalorder %s228, %s229
      %p243 = scmp.eq.s32.totalorder %s29, 7
      %p244 = por %p242, %p243
      %p246 = scmp.ne.s32.totalorder %s229, %s245
      %p247 = scmp.eq.s32.totalorder %s29, 0
      %p248 = por %p246, %p247
      %p249 = scmp.le.s32.totalorder 1, %s23
      %p250 = scmp.lt.s32.totalorder %s23, 9
      %p251 = pnand %p249, %p250
      %p252 = pneg %p251
      // Predicated region
      $region9: #{tpu_custom_call.1} parent=5 // pred_check
        _
      $region10: #{tpu_custom_call.1} parent=5 // pred_check_branch
        %254 = sbr.rel (%p251) target = $region12
      $region11: #{tpu_custom_call.1} parent=5 // pred_region
        %s255 = ssub.s32 %s23, 1
        // Predicated region
        $region13: #{tpu_custom_call.1} parent=11 // pred_check
          %p256 = pneg %p110
        $region14: #{tpu_custom_call.1} parent=11 // pred_check_branch
          %258 = sbr.rel (%p256) target = $region16
        $region15: #{tpu_custom_call.1} parent=11 // pred_region
          _
        $region16: #{tpu_custom_call.1} parent=11 // pred_fallthru
          _
        // Predicated region
        $region17: #{tpu_custom_call.1} parent=11 // pred_check
          %p259 = pneg %p131
        $region18: #{tpu_custom_call.1} parent=11 // pred_check_branch
          %261 = sbr.rel (%p259) target = $region20
        $region19: #{tpu_custom_call.1} parent=11 // pred_region
          _
        $region20: #{tpu_custom_call.1} parent=11 // pred_fallthru
          _
        // Predicated region
        $region21: #{tpu_custom_call.1} parent=11 // pred_check
          %p262 = pneg %p152
        $region22: #{tpu_custom_call.1} parent=11 // pred_check_branch
          %264 = sbr.rel (%p262) target = $region24
        $region23: #{tpu_custom_call.1} parent=11 // pred_region
          %s266 = ssub.s32 2048, 2048
          %267 = vsyncadd [#allocation9], %s266
          %s268 = sshll.u32 [#allocation10], 4
          %s269 = int_to_ptr.vmem [resolvable:$true] %s268
          %274 = dma.hbm_to_vmem [thread:$0]  %s4, 2048, %s269, [#allocation9], 64, 64, 4
        $region24: #{tpu_custom_call.1} parent=11 // pred_fallthru
          _
        // Predicated region
        $region25: #{tpu_custom_call.1} parent=11 // pred_check
          %p275 = pneg %p173
        $region26: #{tpu_custom_call.1} parent=11 // pred_check_branch
          %277 = sbr.rel (%p275) target = $region28
        $region27: #{tpu_custom_call.1} parent=11 // pred_region
          _
        $region28: #{tpu_custom_call.1} parent=11 // pred_fallthru
          _
        // Predicated region
        $region29: #{tpu_custom_call.1} parent=11 // pred_check
          %p278 = pneg %p194
        $region30: #{tpu_custom_call.1} parent=11 // pred_check_branch
          %280 = sbr.rel (%p278) target = $region32
        $region31: #{tpu_custom_call.1} parent=11 // pred_region
          _
        $region32: #{tpu_custom_call.1} parent=11 // pred_fallthru
          _
        // Predicated region
        $region33: #{tpu_custom_call.1} parent=11 // pred_check
          %p281 = pneg %p215
        $region34: #{tpu_custom_call.1} parent=11 // pred_check_branch
          %283 = sbr.rel (%p281) target = $region36
        $region35: #{tpu_custom_call.1} parent=11 // pred_region
          _
        $region36: #{tpu_custom_call.1} parent=11 // pred_fallthru
          _
      $region12: #{tpu_custom_call.1} parent=5 // pred_fallthru
        _
      %p284 = scmp.lt.s32.totalorder %s23, 8
      // Predicated region
      $region37: #{tpu_custom_call.1} parent=5 // pred_check
        %p285 = pneg %p284
      $region38: #{tpu_custom_call.1} parent=5 // pred_check_branch
        %287 = sbr.rel (%p285) target = $region40
      $region39: #{tpu_custom_call.1} parent=5 // pred_region
        // Predicated region
        $region41: #{tpu_custom_call.1} parent=39 // pred_check
          %p288 = pneg %p57
        $region42: #{tpu_custom_call.1} parent=39 // pred_check_branch
          %290 = sbr.rel (%p288) target = $region44
        $region43: #{tpu_custom_call.1} parent=39 // pred_region
          %s291 = sand.u32 %s47, 1
          %s292 = scalar_lea.sflag [#allocation6], %s291
          %s293 = sand.u32 %s47, 1
          %s294 = smul.addr %s293, 32
          %s295 = scalar_lea.vmem [#allocation5], %s294
          %s296 = smul.u32 2, %s30
          %s297 = smul.u32 2, %s31
          %s299 = ssub.s32 512, 512
          %300 = vsyncadd %s292, %s299
          %s301 = smul.addr %s296, 8
          %s302 = sadd.s32 %s297, %s301
          %s303 = smul.addr %s302, 128
          %s304 = scalar_lea.hbm %s0, %s303
          %s305 = sshll.u32 %s295, 4
          %s306 = int_to_ptr.vmem [resolvable:$true] %s305
          %311 = dma.hbm_to_vmem [thread:$0]  %s304, 512, %s306, %s292, 1024, 256, 16
        $region44: #{tpu_custom_call.1} parent=39 // pred_fallthru
          _
        // Predicated region
        $region45: #{tpu_custom_call.1} parent=39 // pred_check
          %p312 = pneg %p83
        $region46: #{tpu_custom_call.1} parent=39 // pred_check_branch
          %314 = sbr.rel (%p312) target = $region48
        $region47: #{tpu_custom_call.1} parent=39 // pred_region
          %s315 = sand.u32 %s23, 1
          %s316 = scalar_lea.sflag [#allocation9], %s315
          %s317 = sand.u32 %s73, 1
          %s318 = smul.addr %s317, 256
          %s319 = scalar_lea.vmem [#allocation8], %s318
          %s320 = smul.u32 32, %s31
          %s322 = ssub.s32 4096, 4096
          %323 = vsyncadd %s316, %s322
          %s324 = smul.addr %s320, 2
          %s325 = smul.addr %s324, 64
          %s326 = scalar_lea.hbm %s1, %s325
          %s327 = sshll.u32 %s319, 4
          %s328 = int_to_ptr.vmem [resolvable:$true] %s327
          %333 = dma.hbm_to_vmem [thread:$0]  %s326, 4096, %s328, %s316, 128, 128, 8
        $region48: #{tpu_custom_call.1} parent=39 // pred_fallthru
          _
      $region40: #{tpu_custom_call.1} parent=5 // pred_fallthru
        _
      %p334 = scmp.le.s32.totalorder 1, %s23
      %p335 = scmp.lt.s32.totalorder %s23, 9
      %p336 = pnand %p334, %p335
      %p337 = pneg %p336
      // Predicated region
      $region49: #{tpu_custom_call.1} parent=5 // pred_check
        _
      $region50: #{tpu_custom_call.1} parent=5 // pred_check_branch
        %339 = sbr.rel (%p336) target = $region52
      $region51: #{tpu_custom_call.1} parent=5 // pred_region
        %s340 = ssub.s32 %s23, 1
        %s341 = sand.u32 %s50, 1
        %s342 = scalar_lea.sflag [#allocation6], %s341
        %s343 = sand.u32 %s50, 1
        %s344 = smul.addr %s343, 32
        %s345 = scalar_lea.vmem [#allocation5], %s344
        // Predicated region
        $region53: #{tpu_custom_call.1} parent=51 // pred_check
          %p346 = pneg %p63
        $region54: #{tpu_custom_call.1} parent=51 // pred_check_branch
          %348 = sbr.rel (%p346) target = $region56
        $region55: #{tpu_custom_call.1} parent=51 // pred_region
          %349 = dma.done %s342, 512
        $region56: #{tpu_custom_call.1} parent=51 // pred_fallthru
          _
        %s350 = sand.u32 %s28, 1
        %s351 = scalar_lea.sflag [#allocation9], %s350
        %s352 = sand.u32 %s76, 1
        %s353 = smul.addr %s352, 256
        %s354 = scalar_lea.vmem [#allocation8], %s353
        // Predicated region
        $region57: #{tpu_custom_call.1} parent=51 // pred_check
          %p355 = pneg %p89
        $region58: #{tpu_custom_call.1} parent=51 // pred_check_branch
          %357 = sbr.rel (%p355) target = $region60
        $region59: #{tpu_custom_call.1} parent=51 // pred_region
          %358 = dma.done %s351, 4096
        $region60: #{tpu_custom_call.1} parent=51 // pred_fallthru
          _
        // Predicated region
        $region61: #{tpu_custom_call.1} parent=51 // pred_check
          %p359 = pneg %p152
        $region62: #{tpu_custom_call.1} parent=51 // pred_check_branch
          %361 = sbr.rel (%p359) target = $region64
        $region63: #{tpu_custom_call.1} parent=51 // pred_region
          %362 = dma.done [#allocation9], 2048
        $region64: #{tpu_custom_call.1} parent=51 // pred_fallthru
          _
        %s363 = sand.u32 %s50, 1
        %s364 = scalar_lea.sflag [#allocation6], %s363
        %s365 = sand.u32 %s50, 1
        %s366 = smul.addr %s365, 32
        %s367 = scalar_lea.vmem [#allocation5], %s366
        %p368 = pneg %p63
        %p369 = pneg %p60
        %s370 = sand.u32 %s28, 1
        %s371 = scalar_lea.sflag [#allocation9], %s370
        %s372 = sand.u32 %s76, 1
        %s373 = smul.addr %s372, 256
        %s374 = scalar_lea.vmem [#allocation8], %s373
        %p375 = pneg %p89
        %p376 = pneg %p86
        %p377 = pneg %p110
        %p378 = pneg %p107
        %p379 = pneg %p131
        %p380 = pneg %p128
        %p381 = pneg %p152
        %p382 = pneg %p149
        %p383 = pneg %p173
        %p384 = pneg %p170
        %p385 = pneg %p194
        %p386 = pneg %p191
        %p387 = pneg %p215
        %p388 = pneg %p212
        %p389 = pneg %p241
        %p390 = pneg %p238
        %s391 = sand.u32 %s228, 1
        %s392 = scalar_lea.sflag [#allocation7], %s391
        %s393 = sand.u32 %s228, 1
        %s394 = smul.addr %s393, 16
        %s395 = scalar_lea.vmem [#allocation11], %s394
        %s396 = smul.u32 2, %s32
        %s397 = smul.u32 2, %s33
        %s398 = smul.u32 32, %s33
        %s399 = smul.u32 2, %s32
        %p401 = scmp.eq.s32.totalorder %s33, 0
        // Predicated region
        $region65: #{tpu_custom_call.1} parent=51 // pred_check
          %p402 = pneg %p401
        $region66: #{tpu_custom_call.1} parent=51 // pred_check_branch
          %404 = sbr.rel (%p402) target = $region68
        $region67: #{tpu_custom_call.1} parent=51 // pred_region
          %405 = vst [vmem:[#allocation2] sm:$0xff] 0.0
          %406 = vst [vmem:[#allocation2 + $0x8] sm:$0xff] 0.0
          %407 = vst [vmem:[#allocation2 + $0x10] sm:$0xff] 0.0
          %408 = vst [vmem:[#allocation2 + $0x18] sm:$0xff] 0.0
          %vm409 = vcmask 7168
          %410 = vst.msk [vmem:[#allocation3] sm:$0xff] %vm409, 0.0
          %411 = vst.msk [vmem:[#allocation3 + $0x8] sm:$0xff] %vm409, 0.0
          %412 = vst.msk [vmem:[#allocation4] sm:$0xff] %vm409, 0.0
          %413 = vst.msk [vmem:[#allocation4 + $0x8] sm:$0xff] %vm409, 0.0
        $region68: #{tpu_custom_call.1} parent=51 // pred_fallthru
          _
        %v414 = vld [vmem:[%s345] sm:$0xff]
        %v415 = vld [vmem:[%s345 + $0x8] sm:$0xff]
        %v416 = vld [vmem:[%s345 + $0x10] sm:$0xff]
        %v417 = vld [vmem:[%s345 + $0x18] sm:$0xff]
        %v418 = vld [vmem:[#allocation3] sm:$0xff]
        %v419 = vld [vmem:[#allocation3 + $0x8] sm:$0xff]
        %v420 = vadd.f32 %v414, %v415
        %421 = vadd.xlane.f32.xlu0 %v420
        %v422 = vpop.xlane.xlu0 %421
        %v423 = vadd.f32 %v416, %v417
        %424 = vadd.xlane.f32.xlu0 %v423
        %v425 = vpop.xlane.xlu0 %424
        %v426 = vadd.f32 %v418, %v422
        %v427 = vadd.f32 %v419, %v425
        %vm428 = vcmask 7168
        %429 = vst.msk [vmem:[#allocation3] sm:$0xff] %vm428, %v426
        %430 = vst.msk [vmem:[#allocation3 + $0x8] sm:$0xff] %vm428, %v427
        %v431 = vld [vmem:[#allocation4] sm:$0xff]
        %v432 = vld [vmem:[#allocation4 + $0x8] sm:$0xff]
        %v433 = vmul.f32 %v414, %v414
        %v434 = vmul.f32 %v415, %v415
        %v435 = vmul.f32 %v416, %v416
        %v436 = vmul.f32 %v417, %v417
        %v437 = vadd.f32 %v433, %v434
        %438 = vadd.xlane.f32.xlu0 %v437
        %v439 = vpop.xlane.xlu0 %438
        %v440 = vadd.f32 %v435, %v436
        %441 = vadd.xlane.f32.xlu0 %v440
        %v442 = vpop.xlane.xlu0 %441
        %v443 = vadd.f32 %v431, %v439
        %v444 = vadd.f32 %v432, %v442
        %445 = vst.msk [vmem:[#allocation4] sm:$0xff] %vm428, %v443
        %446 = vst.msk [vmem:[#allocation4 + $0x8] sm:$0xff] %vm428, %v444
        %v447 = vld [vmem:[#allocation2] sm:$0xff]
        %v448 = vld [vmem:[#allocation2 + $0x8] sm:$0xff]
        %v449 = vld [vmem:[#allocation2 + $0x10] sm:$0xff]
        %v450 = vld [vmem:[#allocation2 + $0x18] sm:$0xff]
        %v451 = vpack.c.bf16 %v416, %v414
        %v452 = vpack.c.bf16 %v417, %v415
        %v453 = vld [vmem:[%s354] sm:$0xff]
        %v454 = vld [vmem:[%s354 + $0x8] sm:$0xff]
        %v455 = vld [vmem:[%s354 + $0x10] sm:$0xff]
        %v456 = vld [vmem:[%s354 + $0x18] sm:$0xff]
        %v457 = vld [vmem:[%s354 + $0x20] sm:$0xff]
        %v458 = vld [vmem:[%s354 + $0x28] sm:$0xff]
        %v459 = vld [vmem:[%s354 + $0x30] sm:$0xff]
        %v460 = vld [vmem:[%s354 + $0x38] sm:$0xff]
        %v461 = vld [vmem:[%s354 + $0x40] sm:$0xff]
        %v462 = vld [vmem:[%s354 + $0x48] sm:$0xff]
        %v463 = vld [vmem:[%s354 + $0x50] sm:$0xff]
        %v464 = vld [vmem:[%s354 + $0x58] sm:$0xff]
        %v465 = vld [vmem:[%s354 + $0x60] sm:$0xff]
        %v466 = vld [vmem:[%s354 + $0x68] sm:$0xff]
        %v467 = vld [vmem:[%s354 + $0x70] sm:$0xff]
        %v468 = vld [vmem:[%s354 + $0x78] sm:$0xff]
        %v469 = vld [vmem:[%s354 + $0x80] sm:$0xff]
        %v470 = vld [vmem:[%s354 + $0x88] sm:$0xff]
        %v471 = vld [vmem:[%s354 + $0x90] sm:$0xff]
        %v472 = vld [vmem:[%s354 + $0x98] sm:$0xff]
        %v473 = vld [vmem:[%s354 + $0xa0] sm:$0xff]
        %v474 = vld [vmem:[%s354 + $0xa8] sm:$0xff]
        %v475 = vld [vmem:[%s354 + $0xb0] sm:$0xff]
        %v476 = vld [vmem:[%s354 + $0xb8] sm:$0xff]
        %v477 = vld [vmem:[%s354 + $0xc0] sm:$0xff]
        %v478 = vld [vmem:[%s354 + $0xc8] sm:$0xff]
        %v479 = vld [vmem:[%s354 + $0xd0] sm:$0xff]
        %v480 = vld [vmem:[%s354 + $0xd8] sm:$0xff]
        %v481 = vld [vmem:[%s354 + $0xe0] sm:$0xff]
        %v482 = vld [vmem:[%s354 + $0xe8] sm:$0xff]
        %v483 = vld [vmem:[%s354 + $0xf0] sm:$0xff]
        %v484 = vld [vmem:[%s354 + $0xf8] sm:$0xff]
        %v517 = vunpack.c.l.b16 %v453
        %v518 = vunpack.c.h.b16 %v453
        %v519 = vunpack.c.l.b16 %v454
        %v520 = vunpack.c.h.b16 %v454
        %v521 = vunpack.c.l.b16 %v455
        %v522 = vunpack.c.h.b16 %v455
        %v523 = vunpack.c.l.b16 %v456
        %v524 = vunpack.c.h.b16 %v456
        %v525 = vunpack.c.l.b16 %v457
        %v526 = vunpack.c.h.b16 %v457
        %v527 = vunpack.c.l.b16 %v458
        %v528 = vunpack.c.h.b16 %v458
        %v529 = vunpack.c.l.b16 %v459
        %v530 = vunpack.c.h.b16 %v459
        %v531 = vunpack.c.l.b16 %v460
        %v532 = vunpack.c.h.b16 %v460
        %v533 = vunpack.c.l.b16 %v461
        %v534 = vunpack.c.h.b16 %v461
        %v535 = vunpack.c.l.b16 %v462
        %v536 = vunpack.c.h.b16 %v462
        %v537 = vunpack.c.l.b16 %v463
        %v538 = vunpack.c.h.b16 %v463
        %v539 = vunpack.c.l.b16 %v464
        %v540 = vunpack.c.h.b16 %v464
        %v541 = vunpack.c.l.b16 %v465
        %v542 = vunpack.c.h.b16 %v465
        %v543 = vunpack.c.l.b16 %v466
        %v544 = vunpack.c.h.b16 %v466
        %v545 = vunpack.c.l.b16 %v467
        %v546 = vunpack.c.h.b16 %v467
        %v547 = vunpack.c.l.b16 %v468
        %v548 = vunpack.c.h.b16 %v468
        %v549 = vunpack.c.l.b16 %v469
        %v550 = vunpack.c.h.b16 %v469
        %v551 = vunpack.c.l.b16 %v470
        %v552 = vunpack.c.h.b16 %v470
        %v553 = vunpack.c.l.b16 %v471
        %v554 = vunpack.c.h.b16 %v471
        %v555 = vunpack.c.l.b16 %v472
        %v556 = vunpack.c.h.b16 %v472
        %v557 = vunpack.c.l.b16 %v473
        %v558 = vunpack.c.h.b16 %v473
        %v559 = vunpack.c.l.b16 %v474
        %v560 = vunpack.c.h.b16 %v474
        %v561 = vunpack.c.l.b16 %v475
        %v562 = vunpack.c.h.b16 %v475
        %v563 = vunpack.c.l.b16 %v476
        %v564 = vunpack.c.h.b16 %v476
        %v565 = vunpack.c.l.b16 %v477
        %v566 = vunpack.c.h.b16 %v477
        %v567 = vunpack.c.l.b16 %v478
        %v568 = vunpack.c.h.b16 %v478
        %v569 = vunpack.c.l.b16 %v479
        %v570 = vunpack.c.h.b16 %v479
        %v571 = vunpack.c.l.b16 %v480
        %v572 = vunpack.c.h.b16 %v480
        %v573 = vunpack.c.l.b16 %v481
        %v574 = vunpack.c.h.b16 %v481
        %v575 = vunpack.c.l.b16 %v482
        %v576 = vunpack.c.h.b16 %v482
        %v577 = vunpack.c.l.b16 %v483
        %v578 = vunpack.c.h.b16 %v483
        %v579 = vunpack.c.l.b16 %v484
        %v580 = vunpack.c.h.b16 %v484
        %v581 = vpack.c.b16 %v519, %v517
        %v582 = vpack.c.b16 %v520, %v518
        %v583 = vpack.c.b16 %v523, %v521
        %v584 = vpack.c.b16 %v524, %v522
        %v585 = vpack.c.b16 %v527, %v525
        %v586 = vpack.c.b16 %v528, %v526
        %v587 = vpack.c.b16 %v531, %v529
        %v588 = vpack.c.b16 %v532, %v530
        %v589 = vpack.c.b16 %v535, %v533
        %v590 = vpack.c.b16 %v536, %v534
        %v591 = vpack.c.b16 %v539, %v537
        %v592 = vpack.c.b16 %v540, %v538
        %v593 = vpack.c.b16 %v543, %v541
        %v594 = vpack.c.b16 %v544, %v542
        %v595 = vpack.c.b16 %v547, %v545
        %v596 = vpack.c.b16 %v548, %v546
        %v597 = vpack.c.b16 %v551, %v549
        %v598 = vpack.c.b16 %v552, %v550
        %v599 = vpack.c.b16 %v555, %v553
        %v600 = vpack.c.b16 %v556, %v554
        %v601 = vpack.c.b16 %v559, %v557
        %v602 = vpack.c.b16 %v560, %v558
        %v603 = vpack.c.b16 %v563, %v561
        %v604 = vpack.c.b16 %v564, %v562
        %v605 = vpack.c.b16 %v567, %v565
        %v606 = vpack.c.b16 %v568, %v566
        %v607 = vpack.c.b16 %v571, %v569
        %v608 = vpack.c.b16 %v572, %v570
        %v609 = vpack.c.b16 %v575, %v573
        %v610 = vpack.c.b16 %v576, %v574
        %v611 = vpack.c.b16 %v579, %v577
        %v612 = vpack.c.b16 %v580, %v578
        %645 = vmatprep.subr.bf16.mxu0 %v582
        %646 = vmatpush1.bf16.msra.mxu0 %v581
        %647 = vmatprep.subr.bf16.mxu0 %v584
        %648 = vmatpush1.bf16.msra.mxu0 %v583
        %649 = vmatprep.subr.bf16.mxu0 %v586
        %650 = vmatpush1.bf16.msra.mxu0 %v585
        %651 = vmatprep.subr.bf16.mxu0 %v588
        %652 = vmatpush1.bf16.msra.mxu0 %v587
        %653 = vmatprep.subr.bf16.mxu0 %v590
        %654 = vmatpush1.bf16.msra.mxu0 %v589
        %655 = vmatprep.subr.bf16.mxu0 %v592
        %656 = vmatpush1.bf16.msra.mxu0 %v591
        %657 = vmatprep.subr.bf16.mxu0 %v594
        %658 = vmatpush1.bf16.msra.mxu0 %v593
        %659 = vmatprep.subr.bf16.mxu0 %v596
        %660 = vmatpush1.bf16.msra.mxu0 %v595
        %661 = vmatprep.subr.bf16.mxu0 %v598
        %662 = vmatpush1.bf16.msra.mxu0 %v597
        %663 = vmatprep.subr.bf16.mxu0 %v600
        %664 = vmatpush1.bf16.msra.mxu0 %v599
        %665 = vmatprep.subr.bf16.mxu0 %v602
        %666 = vmatpush1.bf16.msra.mxu0 %v601
        %667 = vmatprep.subr.bf16.mxu0 %v604
        %668 = vmatpush1.bf16.msra.mxu0 %v603
        %669 = vmatprep.subr.bf16.mxu0 %v606
        %670 = vmatpush1.bf16.msra.mxu0 %v605
        %671 = vmatprep.subr.bf16.mxu0 %v608
        %672 = vmatpush1.bf16.msra.mxu0 %v607
        %673 = vmatprep.subr.bf16.mxu0 %v610
        %674 = vmatpush1.bf16.msra.mxu0 %v609
        %675 = vmatprep.subr.bf16.mxu0 %v612
        %676 = vmatpush1.bf16.msra.mxu0 %v611
        %677 = vmatprep.mubr.bf16.mxu0 %v452
        %678 = vmatmul.mubr.bf16.gmra.mrb[0].mxu0 %v451
        %v679 = vpop.f32.mrb[0].mxu0
        %v680 = vadd.f32 0.0, %v679
        %v681 = vpop.f32.mrb[0].mxu0
        %v682 = vadd.f32 0.0, %v681
        %v683 = vpop.f32.mrb[0].mxu0
        %v684 = vadd.f32 0.0, %v683
        %v685 = vpop.f32.mrb[0].mxu0
        %v686 = vadd.f32 0.0, %v685
        %687 = vdwg.mxu0
        %v688 = vadd.f32 %v447, %v680
        %v689 = vadd.f32 %v448, %v682
        %v690 = vadd.f32 %v449, %v684
        %v691 = vadd.f32 %v450, %v686
        %692 = vst [vmem:[#allocation2] sm:$0xff] %v688
        %693 = vst [vmem:[#allocation2 + $0x8] sm:$0xff] %v689
        %694 = vst [vmem:[#allocation2 + $0x10] sm:$0xff] %v690
        %695 = vst [vmem:[#allocation2 + $0x18] sm:$0xff] %v691
        %p696 = scmp.eq.s32.totalorder %s33, 3
        // Predicated region
        $region69: #{tpu_custom_call.1} parent=51 // pred_check
          %p697 = pneg %p696
        $region70: #{tpu_custom_call.1} parent=51 // pred_check_branch
          %699 = sbr.rel (%p697) target = $region72
        $region71: #{tpu_custom_call.1} parent=51 // pred_region
          %v700 = vld [vmem:[#allocation3] sm:$0xff]
          %v701 = vld [vmem:[#allocation3 + $0x8] sm:$0xff]
          %v702 = vmul.f32 %v700, 0.0009765625
          %v703 = vmul.f32 %v701, 0.0009765625
          %v704 = vld [vmem:[#allocation4] sm:$0xff]
          %v705 = vld [vmem:[#allocation4 + $0x8] sm:$0xff]
          %v706 = vmul.f32 %v704, 0.0009765625
          %v707 = vmul.f32 %v705, 0.0009765625
          %v708 = vmul.f32 %v702, %v702
          %v709 = vmul.f32 %v703, %v703
          %v710 = vsub.f32 %v706, %v708
          %v711 = vsub.f32 %v707, %v709
          %v712 = vadd.f32 %v710, 1e-05
          %v713 = vadd.f32 %v711, 1e-05
          %v714 = vrsqrt.pop %v712
          %v715 = vrsqrt.pop %v713
          %v716 = vld [vmem:[#allocation2] sm:$0xff]
          %v717 = vld [vmem:[#allocation2 + $0x8] sm:$0xff]
          %v718 = vld [vmem:[#allocation2 + $0x10] sm:$0xff]
          %v719 = vld [vmem:[#allocation2 + $0x18] sm:$0xff]
          %v720 = vld [vmem:[%s2] sm:$0x3]
          %722 = vset.pattern.permute.xlu0 0
          %723 = vperm.xlu0 %722, %v702
          %v724 = vpop.permute.xlu0 %723
          %727 = vset.pattern.permute.xlu0 0
          %728 = vperm.xlu0 %727, %v703
          %v729 = vpop.permute.xlu0 %728
          %v732 = vlaneseq
          %v733 = vshrl.u32 %v732, 7
          %v734 = vsub.s32 0, %v733
          %v735 = vrot.slane %v720, %v734
          %v736 = vlaneseq
          %v737 = vshrl.u32 %v736, 7
          %v738 = vsub.s32 1, %v737
          %v739 = vrot.slane %v720, %v738
          %v742 = vmul.f32 %v724, %v735
          %v743 = vmul.f32 %v724, %v739
          %v744 = vmul.f32 %v729, %v735
          %v745 = vmul.f32 %v729, %v739
          %v746 = vsub.f32 %v716, %v742
          %v747 = vsub.f32 %v717, %v743
          %v748 = vsub.f32 %v718, %v744
          %v749 = vsub.f32 %v719, %v745
          %751 = vset.pattern.permute.xlu0 0
          %752 = vperm.xlu0 %751, %v714
          %v753 = vpop.permute.xlu0 %752
          %756 = vset.pattern.permute.xlu0 0
          %757 = vperm.xlu0 %756, %v715
          %v758 = vpop.permute.xlu0 %757
          %v760 = vmul.f32 %v753, %v746
          %v761 = vmul.f32 %v753, %v747
          %v762 = vmul.f32 %v758, %v748
          %v763 = vmul.f32 %v758, %v749
          %v764 = vld [vmem:[%s3] sm:$0x3]
          %v766 = vlaneseq
          %v767 = vshrl.u32 %v766, 7
          %v768 = vsub.s32 0, %v767
          %v769 = vrot.slane %v764, %v768
          %v770 = vlaneseq
          %v771 = vshrl.u32 %v770, 7
          %v772 = vsub.s32 1, %v771
          %v773 = vrot.slane %v764, %v772
          %v776 = vadd.f32 %v760, %v769
          %v777 = vadd.f32 %v761, %v773
          %v778 = vadd.f32 %v762, %v769
          %v779 = vadd.f32 %v763, %v773
          %v780 = vmax.f32 %v776, 0.0
          %v781 = vmax.f32 %v777, 0.0
          %v782 = vmax.f32 %v778, 0.0
          %v783 = vmax.f32 %v779, 0.0
          %v784 = vpack.c.bf16 %v782, %v780
          %v785 = vpack.c.bf16 %v783, %v781
          %v786 = vld [vmem:[#allocation10] sm:$0xf]
          %v787 = vld [vmem:[#allocation10 + $0x4] sm:$0xf]
          %v788 = vld [vmem:[#allocation10 + $0x8] sm:$0xf]
          %v789 = vld [vmem:[#allocation10 + $0xc] sm:$0xf]
          %v790 = vld [vmem:[#allocation10 + $0x10] sm:$0xf]
          %v791 = vld [vmem:[#allocation10 + $0x14] sm:$0xf]
          %v792 = vld [vmem:[#allocation10 + $0x18] sm:$0xf]
          %v793 = vld [vmem:[#allocation10 + $0x1c] sm:$0xf]
          %v794 = vld [vmem:[#allocation10 + $0x20] sm:$0xf]
          %v795 = vld [vmem:[#allocation10 + $0x24] sm:$0xf]
          %v796 = vld [vmem:[#allocation10 + $0x28] sm:$0xf]
          %v797 = vld [vmem:[#allocation10 + $0x2c] sm:$0xf]
          %v798 = vld [vmem:[#allocation10 + $0x30] sm:$0xf]
          %v799 = vld [vmem:[#allocation10 + $0x34] sm:$0xf]
          %v800 = vld [vmem:[#allocation10 + $0x38] sm:$0xf]
          %v801 = vld [vmem:[#allocation10 + $0x3c] sm:$0xf]
          %v802 = vld [vmem:[#allocation10 + $0x40] sm:$0xf]
          %v803 = vld [vmem:[#allocation10 + $0x44] sm:$0xf]
          %v804 = vld [vmem:[#allocation10 + $0x48] sm:$0xf]
          %v805 = vld [vmem:[#allocation10 + $0x4c] sm:$0xf]
          %v806 = vld [vmem:[#allocation10 + $0x50] sm:$0xf]
          %v807 = vld [vmem:[#allocation10 + $0x54] sm:$0xf]
          %v808 = vld [vmem:[#allocation10 + $0x58] sm:$0xf]
          %v809 = vld [vmem:[#allocation10 + $0x5c] sm:$0xf]
          %v810 = vld [vmem:[#allocation10 + $0x60] sm:$0xf]
          %v811 = vld [vmem:[#allocation10 + $0x64] sm:$0xf]
          %v812 = vld [vmem:[#allocation10 + $0x68] sm:$0xf]
          %v813 = vld [vmem:[#allocation10 + $0x6c] sm:$0xf]
          %v814 = vld [vmem:[#allocation10 + $0x70] sm:$0xf]
          %v815 = vld [vmem:[#allocation10 + $0x74] sm:$0xf]
          %v816 = vld [vmem:[#allocation10 + $0x78] sm:$0xf]
          %v817 = vld [vmem:[#allocation10 + $0x7c] sm:$0xf]
          %v818 = vld [vmem:[%s5] sm:$0x1]
          %v820 = vlaneseq
          %v821 = vshrl.u32 %v820, 7
          %v822 = vsub.s32 0, %v821
          %v823 = vrot.slane %v818, %v822
          %v857 = vunpack.c.l.b16 %v786
          %v858 = vunpack.c.l.b16 %v787
          %v859 = vunpack.c.l.b16 %v788
          %v860 = vunpack.c.l.b16 %v789
          %v861 = vunpack.c.l.b16 %v790
          %v862 = vunpack.c.l.b16 %v791
          %v863 = vunpack.c.l.b16 %v792
          %v864 = vunpack.c.l.b16 %v793
          %v865 = vunpack.c.l.b16 %v794
          %v866 = vunpack.c.l.b16 %v795
          %v867 = vunpack.c.l.b16 %v796
          %v868 = vunpack.c.l.b16 %v797
          %v869 = vunpack.c.l.b16 %v798
          %v870 = vunpack.c.l.b16 %v799
          %v871 = vunpack.c.l.b16 %v800
          %v872 = vunpack.c.l.b16 %v801
          %v873 = vunpack.c.l.b16 %v802
          %v874 = vunpack.c.l.b16 %v803
          %v875 = vunpack.c.l.b16 %v804
          %v876 = vunpack.c.l.b16 %v805
          %v877 = vunpack.c.l.b16 %v806
          %v878 = vunpack.c.l.b16 %v807
          %v879 = vunpack.c.l.b16 %v808
          %v880 = vunpack.c.l.b16 %v809
          %v881 = vunpack.c.l.b16 %v810
          %v882 = vunpack.c.l.b16 %v811
          %v883 = vunpack.c.l.b16 %v812
          %v884 = vunpack.c.l.b16 %v813
          %v885 = vunpack.c.l.b16 %v814
          %v886 = vunpack.c.l.b16 %v815
          %v887 = vunpack.c.l.b16 %v816
          %v888 = vunpack.c.l.b16 %v817
          %v889 = vpack.c.b16 %v858, %v857
          %v890 = vpack.c.b16 %v860, %v859
          %v891 = vpack.c.b16 %v862, %v861
          %v892 = vpack.c.b16 %v864, %v863
          %v893 = vpack.c.b16 %v866, %v865
          %v894 = vpack.c.b16 %v868, %v867
          %v895 = vpack.c.b16 %v870, %v869
          %v896 = vpack.c.b16 %v872, %v871
          %v897 = vpack.c.b16 %v874, %v873
          %v898 = vpack.c.b16 %v876, %v875
          %v899 = vpack.c.b16 %v878, %v877
          %v900 = vpack.c.b16 %v880, %v879
          %v901 = vpack.c.b16 %v882, %v881
          %v902 = vpack.c.b16 %v884, %v883
          %v903 = vpack.c.b16 %v886, %v885
          %v904 = vpack.c.b16 %v888, %v887
          %921 = vmatprep.subr.bf16.mxu0 0
          %922 = vmatpush1.bf16.msra.mxu0 %v889
          %923 = vmatprep.subr.bf16.mxu0 0
          %924 = vmatpush1.bf16.msra.mxu0 %v890
          %925 = vmatprep.subr.bf16.mxu0 0
          %926 = vmatpush1.bf16.msra.mxu0 %v891
          %927 = vmatprep.subr.bf16.mxu0 0
          %928 = vmatpush1.bf16.msra.mxu0 %v892
          %929 = vmatprep.subr.bf16.mxu0 0
          %930 = vmatpush1.bf16.msra.mxu0 %v893
          %931 = vmatprep.subr.bf16.mxu0 0
          %932 = vmatpush1.bf16.msra.mxu0 %v894
          %933 = vmatprep.subr.bf16.mxu0 0
          %934 = vmatpush1.bf16.msra.mxu0 %v895
          %935 = vmatprep.subr.bf16.mxu0 0
          %936 = vmatpush1.bf16.msra.mxu0 %v896
          %937 = vmatprep.subr.bf16.mxu0 0
          %938 = vmatpush1.bf16.msra.mxu0 %v897
          %939 = vmatprep.subr.bf16.mxu0 0
          %940 = vmatpush1.bf16.msra.mxu0 %v898
          %941 = vmatprep.subr.bf16.mxu0 0
          %942 = vmatpush1.bf16.msra.mxu0 %v899
          %943 = vmatprep.subr.bf16.mxu0 0
          %944 = vmatpush1.bf16.msra.mxu0 %v900
          %945 = vmatprep.subr.bf16.mxu0 0
          %946 = vmatpush1.bf16.msra.mxu0 %v901
          %947 = vmatprep.subr.bf16.mxu0 0
          %948 = vmatpush1.bf16.msra.mxu0 %v902
          %949 = vmatprep.subr.bf16.mxu0 0
          %950 = vmatpush1.bf16.msra.mxu0 %v903
          %951 = vmatprep.subr.bf16.mxu0 0
          %952 = vmatpush1.bf16.msra.mxu0 %v904
          %953 = vmatprep.mubr.bf16.mxu0 %v785
          %954 = vmatmul.mubr.bf16.gmra.mrb[0].mxu0 %v784
          %v955 = vpop.f32.mrb[0].mxu0
          %v956 = vadd.f32 %v823, %v955
          %v957 = vpop.f32.mrb[0].mxu0
          %v958 = vpop.f32.mrb[0].mxu0
          %v959 = vadd.f32 %v823, %v958
          %v960 = vpop.f32.mrb[0].mxu0
          %961 = vdwg.mxu0
          %v962 = vmax.f32 %v956, 0.0
          %v963 = vmax.f32 %v959, 0.0
          %964 = vadd.xlane.f32.xlu0 %v962
          %v965 = vpop.xlane.xlu0 %964
          %966 = vadd.xlane.f32.xlu0 %v963
          %v967 = vpop.xlane.xlu0 %966
          %v968 = vrcp.pop 128.0
          %v969 = vmul.f32 %v965, %v968
          %v970 = vmul.f32 %v967, %v968
          %v971 = vsub.f32 %v962, %v969
          %v972 = vsub.f32 %v963, %v970
          %v973 = vmul.f32 %v971, %v971
          %v974 = vmul.f32 %v972, %v972
          %975 = vadd.xlane.f32.xlu0 %v973
          %v976 = vpop.xlane.xlu0 %975
          %977 = vadd.xlane.f32.xlu0 %v974
          %v978 = vpop.xlane.xlu0 %977
          %v979 = vmul.f32 %v976, %v968
          %v980 = vmul.f32 %v978, %v968
          %v981 = vadd.f32 %v979, 1e-05
          %v982 = vadd.f32 %v980, 1e-05
          %v983 = vrsqrt.pop %v981
          %v984 = vrsqrt.pop %v982
          %v985 = vmul.f32 %v971, %v983
          %v986 = vmul.f32 %v972, %v984
          %v987 = vld [vmem:[%s6] sm:$0x1]
          %v989 = vlaneseq
          %v990 = vshrl.u32 %v989, 7
          %v991 = vsub.s32 0, %v990
          %v992 = vrot.slane %v987, %v991
          %v994 = vmul.f32 %v985, %v992
          %v995 = vmul.f32 %v986, %v992
          %v996 = vld [vmem:[%s7] sm:$0x1]
          %v998 = vlaneseq
          %v999 = vshrl.u32 %v998, 7
          %v1000 = vsub.s32 0, %v999
          %v1001 = vrot.slane %v996, %v1000
          %v1003 = vadd.f32 %v994, %v1001
          %v1004 = vadd.f32 %v995, %v1001
          %1005 = vst [vmem:[%s395] sm:$0xff] %v1003
          %1006 = vst [vmem:[%s395 + $0x8] sm:$0xff] %v1004
        $region72: #{tpu_custom_call.1} parent=51 // pred_fallthru
          _
        %s1007 = sand.u32 %s228, 1
        %s1008 = scalar_lea.sflag [#allocation7], %s1007
        %s1009 = sand.u32 %s228, 1
        %s1010 = smul.addr %s1009, 16
        %s1011 = scalar_lea.vmem [#allocation11], %s1010
        // Predicated region
        $region73: #{tpu_custom_call.1} parent=51 // pred_check
          %p1012 = pneg %p238
        $region74: #{tpu_custom_call.1} parent=51 // pred_check_branch
          %1014 = sbr.rel (%p1012) target = $region76
        $region75: #{tpu_custom_call.1} parent=51 // pred_region
          %s1015 = smul.u32 2, %s32
          %s1017 = ssub.s32 256, 256
          %1018 = vsyncadd %s1008, %s1017
          %s1019 = smul.addr %s1015, 128
          %s1020 = scalar_lea.hbm %s8, %s1019
          %s1021 = sshll.u32 %s1011, 4
          %s1022 = int_to_ptr.vmem [resolvable:$true] %s1021
          %1027 = dma.vmem_to_hbm [thread:$0]  %s1022, 256, %s1020, %s1008, 128, 128, 8
        $region76: #{tpu_custom_call.1} parent=51 // pred_fallthru
          _
      $region52: #{tpu_custom_call.1} parent=5 // pred_fallthru
        _
      %p1028 = scmp.le.s32.totalorder 2, %s23
      // Predicated region
      $region77: #{tpu_custom_call.1} parent=5 // pred_check
        %p1029 = pneg %p1028
      $region78: #{tpu_custom_call.1} parent=5 // pred_check_branch
        %1031 = sbr.rel (%p1029) target = $region80
      $region79: #{tpu_custom_call.1} parent=5 // pred_region
        %s1032 = ssub.s32 %s23, 2
        // Predicated region
        $region81: #{tpu_custom_call.1} parent=79 // pred_check
          %p1033 = pneg %p244
        $region82: #{tpu_custom_call.1} parent=79 // pred_check_branch
          %1035 = sbr.rel (%p1033) target = $region84
        $region83: #{tpu_custom_call.1} parent=79 // pred_region
          %s1036 = sand.u32 %s229, 1
          %s1037 = scalar_lea.sflag [#allocation7], %s1036
          %s1038 = sand.u32 %s229, 1
          %s1039 = smul.addr %s1038, 16
          %s1040 = scalar_lea.vmem [#allocation11], %s1039
          %1041 = dma.done %s1037, 256
        $region84: #{tpu_custom_call.1} parent=79 // pred_fallthru
          _
      $region80: #{tpu_custom_call.1} parent=5 // pred_fallthru
        _
    $region6: #{tpu_custom_call.1} parent=1 // loop_footer
      %s27 = sadd.s32 1, %s23
    $region7: #{tpu_custom_call.1} parent=1 // loop_footer_branch
      %22 = sbr.rel target = $region3
    $region8: #{tpu_custom_call.1} parent=1 // loop_exit
      _
    %1042 = vsyncpa [#allocation6], 1
    %s1043 = scalar_lea.sflag [#allocation6], 1
    %1044 = vsyncpa %s1043, 1
    %1045 = vsyncpa [#allocation9], 1
    %s1046 = scalar_lea.sflag [#allocation9], 1
    %1047 = vsyncpa %s1046, 1
    %1048 = vsyncpa [#allocation7], 1
    %s1049 = scalar_lea.sflag [#allocation7], 1
    %1050 = vsyncpa %s1049, 1

// kernel: tpu_custom_call.1
$region0: #{tpu_custom_call.1}
  #allocation0 [shape = 'u32[]', space=smem, size = 0x4, offset = 0x4, fixed_abs, tag = 'smem constant byte address 0x4 - core index']
  #allocation1 [shape = 'u32[144,128]{1,0:T(1,128)}', space=vmem, size = 0x12000, scoped, tag = 'internal scratch']
  #allocation2 [shape = 'f32[16,256]{1,0:T(8,128)}', space=vmem, size = 0x4000, scoped, tag = 'scratch operand']
  #allocation3 [shape = 'f32[16,1]{1,0:T(8,128)}', space=vmem, size = 0x2000, scoped, tag = 'scratch operand']
  #allocation4 [shape = 'f32[16,1]{1,0:T(8,128)}', space=vmem, size = 0x2000, scoped, tag = 'scratch operand']
  %s0 = inlined_call_operand.hbm [shape: f32[32,1024], index: 0, kind: input, shape index: {}]
  %s1 = inlined_call_operand.hbm [shape: bf16[1024,256], index: 1, kind: input, shape index: {}]
  %s2 = inlined_call_operand.vmem [shape: f32[1,256], index: 2, kind: input, shape index: {}]
  %s3 = inlined_call_operand.vmem [shape: f32[1,256], index: 3, kind: input, shape index: {}]
  %s4 = inlined_call_operand.hbm [shape: bf16[256,128], index: 4, kind: input, shape index: {}]
  %s5 = inlined_call_operand.vmem [shape: f32[1,128], index: 5, kind: input, shape index: {}]
  %s6 = inlined_call_operand.vmem [shape: f32[1,128], index: 6, kind: input, shape index: {}]
  %s7 = inlined_call_operand.vmem [shape: f32[1,128], index: 7, kind: input, shape index: {}]
  %s8 = inlined_call_operand.hbm [shape: f32[32,128], index: 8, kind: output, shape index: {}]
  %s9 = sld [smem:[#allocation0]]
  $region85: #{tpu_custom_call.1} parent=0
    _
  %s11 = ssub.s32 1, %s9
  %s12 = scalar_select 0, %s11, %s9
  $region1: #{tpu_custom_call.1} parent=0
    #allocation5 [shape = 'u8[32768]{0}', space=vmem, size = 0x8000, scoped, tag = 'input window, operand 0']
    #allocation6 [shape = 's32[2]{0}', space=sflag, size = 0x8, scoped, tag = 'scoped memory for tpu_custom_call.1']
    #allocation7 [shape = 's32[2]{0}', space=sflag, size = 0x8, scoped, tag = 'scoped memory for tpu_custom_call.1']
    #allocation8 [shape = 'u8[262144]{0}', space=vmem, size = 0x40000, scoped, tag = 'input window, operand 1']
    #allocation9 [shape = 's32[2]{0}', space=sflag, size = 0x8, scoped, tag = 'scoped memory for tpu_custom_call.1']
    #allocation10 [shape = 'u8[65536]{0}', space=vmem, size = 0x10000, scoped, tag = 'input window, operand 4, single buffered']
    #allocation11 [shape = 'u8[16384]{0}', space=vmem, size = 0x4000, scoped, tag = 'output window, operand 0']
    %13 = vsyncpa [#allocation6], 0
    %s14 = scalar_lea.sflag [#allocation6], 1
    %15 = vsyncpa %s14, 0
    %16 = vsyncpa [#allocation9], 0
    %s17 = scalar_lea.sflag [#allocation9], 1
    %18 = vsyncpa %s17, 0
    %19 = vsyncpa [#allocation7], 0
    %s20 = scalar_lea.sflag [#allocation7], 1
    %21 = vsyncpa %s20, 0
    loop: start=0, step=1, limit=10
    $region2: #{tpu_custom_call.1} parent=1 // loop_pre_header
      _
    $region3: #{tpu_custom_call.1} parent=1 // loop_header
      %s23 = sphi 0, %s27
      %p24 = scmp.ge.s32.totalorder %s23, 10
      %s30 = sphi 0, %s42
      %s31 = sphi 0, %s38
      %s32 = sphi 0, %s30
      %s33 = sphi 0, %s31
      %s34 = sphi 0, %s32
      %s35 = sphi 0, %s33
      %s47 = sphi 0, %s49
      %s50 = sphi 0, %s47
      %s51 = sphi 0, %s50
      %s67 = sphi 0, %s51
      %s73 = sphi 0, %s75
      %s76 = sphi 0, %s73
      %s77 = sphi 0, %s76
      %s93 = sphi 0, %s77
      %s97 = sphi 0, %s97
      %s99 = sphi 0, %s97
      %s100 = sphi 0, %s99
      %s114 = sphi 0, %s100
      %s118 = sphi 0, %s118
      %s120 = sphi 0, %s118
      %s121 = sphi 0, %s120
      %s135 = sphi 0, %s121
      %s139 = sphi 0, %s139
      %s141 = sphi 0, %s139
      %s142 = sphi 0, %s141
      %s156 = sphi 0, %s142
      %s160 = sphi 0, %s160
      %s162 = sphi 0, %s160
      %s163 = sphi 0, %s162
      %s177 = sphi 0, %s163
      %s181 = sphi 0, %s181
      %s183 = sphi 0, %s181
      %s184 = sphi 0, %s183
      %s198 = sphi 0, %s184
      %s202 = sphi 0, %s202
      %s204 = sphi 0, %s202
      %s205 = sphi 0, %s204
      %s219 = sphi 0, %s205
      %s225 = sphi 0, %s227
      %s228 = sphi 0, %s225
      %s229 = sphi 0, %s228
      %s245 = sphi 0, %s229
    $region4: #{tpu_custom_call.1} parent=1 // loop_header_branch
      %26 = sbr.rel (%p24) target = $region8
    $region5: #{tpu_custom_call.1} parent=1 // loop_body
      %s28 = ssub.s32 %s23, 1
      %s29 = ssub.s32 %s23, 2
      %s36 = sadd.s32 1, %s31
      %p37 = scmp.ge.s32.totalorder %s36, 4
      %s38 = scalar_select %p37, 0, %s36
      %s39 = sadd.s32 1, %s30
      %s40 = scalar_select %p37, %s39, %s30
      %p41 = scmp.ge.s32.totalorder %s40, 2
      %s42 = scalar_select %p41, 0, %s40
      %s43 = ssub.s32 %s30, %s42
      %s44 = ssub.s32 %s31, %s38
      %s45 = sor.u32 %s43, %s44
      %p46 = scmp.eq.s32.totalorder %s45, 0
      %s48 = sadd.s32 %s47, 1
      %s49 = scalar_select %p46, %s47, %s48
      %p52 = pneg %p46
      %p53 = scmp.eq.s32.totalorder %s23, 7
      %p54 = por %p52, %p53
      %p55 = scmp.ne.s32.totalorder %s47, %s50
      %p56 = scmp.eq.s32.totalorder %s23, 0
      %p57 = por %p55, %p56
      %p58 = scmp.ne.s32.totalorder %s47, %s50
      %p59 = scmp.eq.s32.totalorder %s28, 7
      %p60 = por %p58, %p59
      %p61 = scmp.ne.s32.totalorder %s50, %s51
      %p62 = scmp.eq.s32.totalorder %s28, 0
      %p63 = por %p61, %p62
      %p64 = scmp.ne.s32.totalorder %s50, %s51
      %p65 = scmp.eq.s32.totalorder %s29, 7
      %p66 = por %p64, %p65
      %p68 = scmp.ne.s32.totalorder %s51, %s67
      %p69 = scmp.eq.s32.totalorder %s29, 0
      %p70 = por %p68, %p69
      %s71 = ssub.s32 %s31, %s38
      %p72 = scmp.eq.s32.totalorder %s71, 0
      %s74 = sadd.s32 %s73, 1
      %s75 = scalar_select %p72, %s73, %s74
      %p78 = pneg %p72
      %p79 = scmp.eq.s32.totalorder %s23, 7
      %p80 = por %p78, %p79
      %p81 = scmp.ne.s32.totalorder %s73, %s76
      %p82 = scmp.eq.s32.totalorder %s23, 0
      %p83 = por %p81, %p82
      %p84 = scmp.ne.s32.totalorder %s73, %s76
      %p85 = scmp.eq.s32.totalorder %s28, 7
      %p86 = por %p84, %p85
      %p87 = scmp.ne.s32.totalorder %s76, %s77
      %p88 = scmp.eq.s32.totalorder %s28, 0
      %p89 = por %p87, %p88
      %p90 = scmp.ne.s32.totalorder %s76, %s77
      %p91 = scmp.eq.s32.totalorder %s29, 7
      %p92 = por %p90, %p91
      %p94 = scmp.ne.s32.totalorder %s77, %s93
      %p95 = scmp.eq.s32.totalorder %s29, 0
      %p96 = por %p94, %p95
      %s98 = sadd.s32 %s97, 1
      %p101 = scmp.eq.s32.totalorder %s23, 7
      %p102 = scmp.ne.s32.totalorder %s97, %s99
      %p103 = scmp.eq.s32.totalorder %s23, 0
      %p104 = por %p102, %p103
      %p105 = scmp.ne.s32.totalorder %s97, %s99
      %p106 = scmp.eq.s32.totalorder %s28, 7
      %p107 = por %p105, %p106
      %p108 = scmp.ne.s32.totalorder %s99, %s100
      %p109 = scmp.eq.s32.totalorder %s28, 0
      %p110 = por %p108, %p109
      %p111 = scmp.ne.s32.totalorder %s99, %s100
      %p112 = scmp.eq.s32.totalorder %s29, 7
      %p113 = por %p111, %p112
      %p115 = scmp.ne.s32.totalorder %s100, %s114
      %p116 = scmp.eq.s32.totalorder %s29, 0
      %p117 = por %p115, %p116
      %s119 = sadd.s32 %s118, 1
      %p122 = scmp.eq.s32.totalorder %s23, 7
      %p123 = scmp.ne.s32.totalorder %s118, %s120
      %p124 = scmp.eq.s32.totalorder %s23, 0
      %p125 = por %p123, %p124
      %p126 = scmp.ne.s32.totalorder %s118, %s120
      %p127 = scmp.eq.s32.totalorder %s28, 7
      %p128 = por %p126, %p127
      %p129 = scmp.ne.s32.totalorder %s120, %s121
      %p130 = scmp.eq.s32.totalorder %s28, 0
      %p131 = por %p129, %p130
      %p132 = scmp.ne.s32.totalorder %s120, %s121
      %p133 = scmp.eq.s32.totalorder %s29, 7
      %p134 = por %p132, %p133
      %p136 = scmp.ne.s32.totalorder %s121, %s135
      %p137 = scmp.eq.s32.totalorder %s29, 0
      %p138 = por %p136, %p137
      %s140 = sadd.s32 %s139, 1
      %p143 = scmp.eq.s32.totalorder %s23, 7
      %p144 = scmp.ne.s32.totalorder %s139, %s141
      %p145 = scmp.eq.s32.totalorder %s23, 0
      %p146 = por %p144, %p145
      %p147 = scmp.ne.s32.totalorder %s139, %s141
      %p148 = scmp.eq.s32.totalorder %s28, 7
      %p149 = por %p147, %p148
      %p150 = scmp.ne.s32.totalorder %s141, %s142
      %p151 = scmp.eq.s32.totalorder %s28, 0
      %p152 = por %p150, %p151
      %p153 = scmp.ne.s32.totalorder %s141, %s142
      %p154 = scmp.eq.s32.totalorder %s29, 7
      %p155 = por %p153, %p154
      %p157 = scmp.ne.s32.totalorder %s142, %s156
      %p158 = scmp.eq.s32.totalorder %s29, 0
      %p159 = por %p157, %p158
      %s161 = sadd.s32 %s160, 1
      %p164 = scmp.eq.s32.totalorder %s23, 7
      %p165 = scmp.ne.s32.totalorder %s160, %s162
      %p166 = scmp.eq.s32.totalorder %s23, 0
      %p167 = por %p165, %p166
      %p168 = scmp.ne.s32.totalorder %s160, %s162
      %p169 = scmp.eq.s32.totalorder %s28, 7
      %p170 = por %p168, %p169
      %p171 = scmp.ne.s32.totalorder %s162, %s163
      %p172 = scmp.eq.s32.totalorder %s28, 0
      %p173 = por %p171, %p172
      %p174 = scmp.ne.s32.totalorder %s162, %s163
      %p175 = scmp.eq.s32.totalorder %s29, 7
      %p176 = por %p174, %p175
      %p178 = scmp.ne.s32.totalorder %s163, %s177
      %p179 = scmp.eq.s32.totalorder %s29, 0
      %p180 = por %p178, %p179
      %s182 = sadd.s32 %s181, 1
      %p185 = scmp.eq.s32.totalorder %s23, 7
      %p186 = scmp.ne.s32.totalorder %s181, %s183
      %p187 = scmp.eq.s32.totalorder %s23, 0
      %p188 = por %p186, %p187
      %p189 = scmp.ne.s32.totalorder %s181, %s183
      %p190 = scmp.eq.s32.totalorder %s28, 7
      %p191 = por %p189, %p190
      %p192 = scmp.ne.s32.totalorder %s183, %s184
      %p193 = scmp.eq.s32.totalorder %s28, 0
      %p194 = por %p192, %p193
      %p195 = scmp.ne.s32.totalorder %s183, %s184
      %p196 = scmp.eq.s32.totalorder %s29, 7
      %p197 = por %p195, %p196
      %p199 = scmp.ne.s32.totalorder %s184, %s198
      %p200 = scmp.eq.s32.totalorder %s29, 0
      %p201 = por %p199, %p200
      %s203 = sadd.s32 %s202, 1
      %p206 = scmp.eq.s32.totalorder %s23, 7
      %p207 = scmp.ne.s32.totalorder %s202, %s204
      %p208 = scmp.eq.s32.totalorder %s23, 0
      %p209 = por %p207, %p208
      %p210 = scmp.ne.s32.totalorder %s202, %s204
      %p211 = scmp.eq.s32.totalorder %s28, 7
      %p212 = por %p210, %p211
      %p213 = scmp.ne.s32.totalorder %s204, %s205
      %p214 = scmp.eq.s32.totalorder %s28, 0
      %p215 = por %p213, %p214
      %p216 = scmp.ne.s32.totalorder %s204, %s205
      %p217 = scmp.eq.s32.totalorder %s29, 7
      %p218 = por %p216, %p217
      %p220 = scmp.ne.s32.totalorder %s205, %s219
      %p221 = scmp.eq.s32.totalorder %s29, 0
      %p222 = por %p220, %p221
      %s223 = ssub.s32 %s30, %s42
      %p224 = scmp.eq.s32.totalorder %s223, 0
      %s226 = sadd.s32 %s225, 1
      %s227 = scalar_select %p224, %s225, %s226
      %p230 = pneg %p224
      %p231 = scmp.eq.s32.totalorder %s23, 7
      %p232 = por %p230, %p231
      %p233 = scmp.ne.s32.totalorder %s225, %s228
      %p234 = scmp.eq.s32.totalorder %s23, 0
      %p235 = por %p233, %p234
      %p236 = scmp.ne.s32.totalorder %s225, %s228
      %p237 = scmp.eq.s32.totalorder %s28, 7
      %p238 = por %p236, %p237
      %p239 = scmp.ne.s32.totalorder %s228, %s229
      %p240 = scmp.eq.s32.totalorder %s28, 0
      %p241 = por %p239, %p240
      %p242 = scmp.ne.s32.totalorder %s228, %s229
      %p243 = scmp.eq.s32.totalorder %s29, 7
      %p244 = por %p242, %p243
      %p246 = scmp.ne.s32.totalorder %s229, %s245
      %p247 = scmp.eq.s32.totalorder %s29, 0
      %p248 = por %p246, %p247
      %p249 = scmp.le.s32.totalorder 1, %s23
      %p250 = scmp.lt.s32.totalorder %s23, 9
      %p251 = pnand %p249, %p250
      %p252 = pneg %p251
      // Predicated region
      $region9: #{tpu_custom_call.1} parent=5 // pred_check
        _
      $region10: #{tpu_custom_call.1} parent=5 // pred_check_branch
        %254 = sbr.rel (%p251) target = $region12
      $region11: #{tpu_custom_call.1} parent=5 // pred_region
        %s255 = ssub.s32 %s23, 1
        // Predicated region
        $region13: #{tpu_custom_call.1} parent=11 // pred_check
          %p256 = pneg %p110
        $region14: #{tpu_custom_call.1} parent=11 // pred_check_branch
          %258 = sbr.rel (%p256) target = $region16
        $region15: #{tpu_custom_call.1} parent=11 // pred_region
          _
        $region16: #{tpu_custom_call.1} parent=11 // pred_fallthru
          _
        // Predicated region
        $region17: #{tpu_custom_call.1} parent=11 // pred_check
          %p259 = pneg %p131
        $region18: #{tpu_custom_call.1} parent=11 // pred_check_branch
          %261 = sbr.rel (%p259) target = $region20
        $region19: #{tpu_custom_call.1} parent=11 // pred_region
          _
        $region20: #{tpu_custom_call.1} parent=11 // pred_fallthru
          _
        // Predicated region
        $region21: #{tpu_custom_call.1} parent=11 // pred_check
          %p262 = pneg %p152
        $region22: #{tpu_custom_call.1} parent=11 // pred_check_branch
          %264 = sbr.rel (%p262) target = $region24
        $region23: #{tpu_custom_call.1} parent=11 // pred_region
          %s266 = ssub.s32 2048, 2048
          %267 = vsyncadd [#allocation9], %s266
          %s268 = sshll.u32 [#allocation10], 4
          %s269 = int_to_ptr.vmem [resolvable:$true] %s268
          %274 = dma.hbm_to_vmem [thread:$0]  %s4, 2048, %s269, [#allocation9], 64, 64, 4
        $region24: #{tpu_custom_call.1} parent=11 // pred_fallthru
          _
        // Predicated region
        $region25: #{tpu_custom_call.1} parent=11 // pred_check
          %p275 = pneg %p173
        $region26: #{tpu_custom_call.1} parent=11 // pred_check_branch
          %277 = sbr.rel (%p275) target = $region28
        $region27: #{tpu_custom_call.1} parent=11 // pred_region
          _
        $region28: #{tpu_custom_call.1} parent=11 // pred_fallthru
          _
        // Predicated region
        $region29: #{tpu_custom_call.1} parent=11 // pred_check
          %p278 = pneg %p194
        $region30: #{tpu_custom_call.1} parent=11 // pred_check_branch
          %280 = sbr.rel (%p278) target = $region32
        $region31: #{tpu_custom_call.1} parent=11 // pred_region
          _
        $region32: #{tpu_custom_call.1} parent=11 // pred_fallthru
          _
        // Predicated region
        $region33: #{tpu_custom_call.1} parent=11 // pred_check
          %p281 = pneg %p215
        $region34: #{tpu_custom_call.1} parent=11 // pred_check_branch
          %283 = sbr.rel (%p281) target = $region36
        $region35: #{tpu_custom_call.1} parent=11 // pred_region
          _
        $region36: #{tpu_custom_call.1} parent=11 // pred_fallthru
          _
      $region12: #{tpu_custom_call.1} parent=5 // pred_fallthru
        _
      %p284 = scmp.lt.s32.totalorder %s23, 8
      // Predicated region
      $region37: #{tpu_custom_call.1} parent=5 // pred_check
        %p285 = pneg %p284
      $region38: #{tpu_custom_call.1} parent=5 // pred_check_branch
        %287 = sbr.rel (%p285) target = $region40
      $region39: #{tpu_custom_call.1} parent=5 // pred_region
        // Predicated region
        $region41: #{tpu_custom_call.1} parent=39 // pred_check
          %p288 = pneg %p57
        $region42: #{tpu_custom_call.1} parent=39 // pred_check_branch
          %290 = sbr.rel (%p288) target = $region44
        $region43: #{tpu_custom_call.1} parent=39 // pred_region
          %s291 = sand.u32 %s47, 1
          %s292 = scalar_lea.sflag [#allocation6], %s291
          %s293 = sand.u32 %s47, 1
          %s294 = smul.addr %s293, 32
          %s295 = scalar_lea.vmem [#allocation5], %s294
          %s296 = smul.u32 2, %s30
          %s297 = smul.u32 2, %s31
          %s299 = ssub.s32 512, 512
          %300 = vsyncadd %s292, %s299
          %s301 = smul.addr %s296, 8
          %s302 = sadd.s32 %s297, %s301
          %s303 = smul.addr %s302, 128
          %s304 = scalar_lea.hbm %s0, %s303
          %s305 = sshll.u32 %s295, 4
          %s306 = int_to_ptr.vmem [resolvable:$true] %s305
          %311 = dma.hbm_to_vmem [thread:$0]  %s304, 512, %s306, %s292, 1024, 256, 16
        $region44: #{tpu_custom_call.1} parent=39 // pred_fallthru
          _
        // Predicated region
        $region45: #{tpu_custom_call.1} parent=39 // pred_check
          %p312 = pneg %p83
        $region46: #{tpu_custom_call.1} parent=39 // pred_check_branch
          %314 = sbr.rel (%p312) target = $region48
        $region47: #{tpu_custom_call.1} parent=39 // pred_region
          %s315 = sand.u32 %s23, 1
          %s316 = scalar_lea.sflag [#allocation9], %s315
          %s317 = sand.u32 %s73, 1
          %s318 = smul.addr %s317, 256
          %s319 = scalar_lea.vmem [#allocation8], %s318
          %s320 = smul.u32 32, %s31
          %s322 = ssub.s32 4096, 4096
          %323 = vsyncadd %s316, %s322
          %s324 = smul.addr %s320, 2
          %s325 = smul.addr %s324, 64
          %s326 = scalar_lea.hbm %s1, %s325
          %s327 = sshll.u32 %s319, 4
          %s328 = int_to_ptr.vmem [resolvable:$true] %s327
          %333 = dma.hbm_to_vmem [thread:$0]  %s326, 4096, %s328, %s316, 128, 128, 8
        $region48: #{tpu_custom_call.1} parent=39 // pred_fallthru
          _
      $region40: #{tpu_custom_call.1} parent=5 // pred_fallthru
        _
      %p334 = scmp.le.s32.totalorder 1, %s23
      %p335 = scmp.lt.s32.totalorder %s23, 9
      %p336 = pnand %p334, %p335
      %p337 = pneg %p336
      // Predicated region
      $region49: #{tpu_custom_call.1} parent=5 // pred_check
        _
      $region50: #{tpu_custom_call.1} parent=5 // pred_check_branch
        %339 = sbr.rel (%p336) target = $region52
      $region51: #{tpu_custom_call.1} parent=5 // pred_region
        %s340 = ssub.s32 %s23, 1
        %s341 = sand.u32 %s50, 1
        %s342 = scalar_lea.sflag [#allocation6], %s341
        %s343 = sand.u32 %s50, 1
        %s344 = smul.addr %s343, 32
        %s345 = scalar_lea.vmem [#allocation5], %s344
        // Predicated region
        $region53: #{tpu_custom_call.1} parent=51 // pred_check
          %p346 = pneg %p63
        $region54: #{tpu_custom_call.1} parent=51 // pred_check_branch
          %348 = sbr.rel (%p346) target = $region56
        $region55: #{tpu_custom_call.1} parent=51 // pred_region
          %349 = dma.done %s342, 512
        $region56: #{tpu_custom_call.1} parent=51 // pred_fallthru
          _
        %s350 = sand.u32 %s28, 1
        %s351 = scalar_lea.sflag [#allocation9], %s350
        %s352 = sand.u32 %s76, 1
        %s353 = smul.addr %s352, 256
        %s354 = scalar_lea.vmem [#allocation8], %s353
        // Predicated region
        $region57: #{tpu_custom_call.1} parent=51 // pred_check
          %p355 = pneg %p89
        $region58: #{tpu_custom_call.1} parent=51 // pred_check_branch
          %357 = sbr.rel (%p355) target = $region60
        $region59: #{tpu_custom_call.1} parent=51 // pred_region
          %358 = dma.done %s351, 4096
        $region60: #{tpu_custom_call.1} parent=51 // pred_fallthru
          _
        // Predicated region
        $region61: #{tpu_custom_call.1} parent=51 // pred_check
          %p359 = pneg %p152
        $region62: #{tpu_custom_call.1} parent=51 // pred_check_branch
          %361 = sbr.rel (%p359) target = $region64
        $region63: #{tpu_custom_call.1} parent=51 // pred_region
          %362 = dma.done [#allocation9], 2048
        $region64: #{tpu_custom_call.1} parent=51 // pred_fallthru
          _
        %s363 = sand.u32 %s50, 1
        %s364 = scalar_lea.sflag [#allocation6], %s363
        %s365 = sand.u32 %s50, 1
        %s366 = smul.addr %s365, 32
        %s367 = scalar_lea.vmem [#allocation5], %s366
        %p368 = pneg %p63
        %p369 = pneg %p60
        %s370 = sand.u32 %s28, 1
        %s371 = scalar_lea.sflag [#allocation9], %s370
        %s372 = sand.u32 %s76, 1
        %s373 = smul.addr %s372, 256
        %s374 = scalar_lea.vmem [#allocation8], %s373
        %p375 = pneg %p89
        %p376 = pneg %p86
        %p377 = pneg %p110
        %p378 = pneg %p107
        %p379 = pneg %p131
        %p380 = pneg %p128
        %p381 = pneg %p152
        %p382 = pneg %p149
        %p383 = pneg %p173
        %p384 = pneg %p170
        %p385 = pneg %p194
        %p386 = pneg %p191
        %p387 = pneg %p215
        %p388 = pneg %p212
        %p389 = pneg %p241
        %p390 = pneg %p238
        %s391 = sand.u32 %s228, 1
        %s392 = scalar_lea.sflag [#allocation7], %s391
        %s393 = sand.u32 %s228, 1
        %s394 = smul.addr %s393, 16
        %s395 = scalar_lea.vmem [#allocation11], %s394
        %s396 = smul.u32 2, %s32
        %s397 = smul.u32 2, %s33
        %s398 = smul.u32 32, %s33
        %s399 = smul.u32 2, %s32
        %p401 = scmp.eq.s32.totalorder %s33, 0
        // Predicated region
        $region65: #{tpu_custom_call.1} parent=51 // pred_check
          %p402 = pneg %p401
        $region66: #{tpu_custom_call.1} parent=51 // pred_check_branch
          %404 = sbr.rel (%p402) target = $region68
        $region67: #{tpu_custom_call.1} parent=51 // pred_region
          %405 = vst [vmem:[#allocation2] sm:$0xff] 0.0
          %406 = vst [vmem:[#allocation2 + $0x8] sm:$0xff] 0.0
          %407 = vst [vmem:[#allocation2 + $0x10] sm:$0xff] 0.0
          %408 = vst [vmem:[#allocation2 + $0x18] sm:$0xff] 0.0
          %vm409 = vcmask 7168
          %410 = vst.msk [vmem:[#allocation3] sm:$0xff] %vm409, 0.0
          %411 = vst.msk [vmem:[#allocation3 + $0x8] sm:$0xff] %vm409, 0.0
          %412 = vst.msk [vmem:[#allocation4] sm:$0xff] %vm409, 0.0
          %413 = vst.msk [vmem:[#allocation4 + $0x8] sm:$0xff] %vm409, 0.0
        $region68: #{tpu_custom_call.1} parent=51 // pred_fallthru
          _
        %v414 = vld [vmem:[%s345] sm:$0xff]
        %v415 = vld [vmem:[%s345 + $0x8] sm:$0xff]
        %v416 = vld [vmem:[%s345 + $0x10] sm:$0xff]
        %v417 = vld [vmem:[%s345 + $0x18] sm:$0xff]
        %v418 = vld [vmem:[#allocation3] sm:$0xff]
        %v419 = vld [vmem:[#allocation3 + $0x8] sm:$0xff]
        %v420 = vadd.f32 %v414, %v415
        %421 = vadd.xlane.f32.xlu0 %v420
        %v422 = vpop.xlane.xlu0 %421
        %v423 = vadd.f32 %v416, %v417
        %424 = vadd.xlane.f32.xlu0 %v423
        %v425 = vpop.xlane.xlu0 %424
        %v426 = vadd.f32 %v418, %v422
        %v427 = vadd.f32 %v419, %v425
        %vm428 = vcmask 7168
        %429 = vst.msk [vmem:[#allocation3] sm:$0xff] %vm428, %v426
        %430 = vst.msk [vmem:[#allocation3 + $0x8] sm:$0xff] %vm428, %v427
        %v431 = vld [vmem:[#allocation4] sm:$0xff]
        %v432 = vld [vmem:[#allocation4 + $0x8] sm:$0xff]
        %v433 = vmul.f32 %v414, %v414
        %v434 = vmul.f32 %v415, %v415
        %v435 = vmul.f32 %v416, %v416
        %v436 = vmul.f32 %v417, %v417
        %v437 = vadd.f32 %v433, %v434
        %438 = vadd.xlane.f32.xlu0 %v437
        %v439 = vpop.xlane.xlu0 %438
        %v440 = vadd.f32 %v435, %v436
        %441 = vadd.xlane.f32.xlu0 %v440
        %v442 = vpop.xlane.xlu0 %441
        %v443 = vadd.f32 %v431, %v439
        %v444 = vadd.f32 %v432, %v442
        %445 = vst.msk [vmem:[#allocation4] sm:$0xff] %vm428, %v443
        %446 = vst.msk [vmem:[#allocation4 + $0x8] sm:$0xff] %vm428, %v444
        %v447 = vld [vmem:[#allocation2] sm:$0xff]
        %v448 = vld [vmem:[#allocation2 + $0x8] sm:$0xff]
        %v449 = vld [vmem:[#allocation2 + $0x10] sm:$0xff]
        %v450 = vld [vmem:[#allocation2 + $0x18] sm:$0xff]
        %v451 = vpack.c.bf16 %v416, %v414
        %v452 = vpack.c.bf16 %v417, %v415
        %v453 = vld [vmem:[%s354] sm:$0xff]
        %v454 = vld [vmem:[%s354 + $0x8] sm:$0xff]
        %v455 = vld [vmem:[%s354 + $0x10] sm:$0xff]
        %v456 = vld [vmem:[%s354 + $0x18] sm:$0xff]
        %v457 = vld [vmem:[%s354 + $0x20] sm:$0xff]
        %v458 = vld [vmem:[%s354 + $0x28] sm:$0xff]
        %v459 = vld [vmem:[%s354 + $0x30] sm:$0xff]
        %v460 = vld [vmem:[%s354 + $0x38] sm:$0xff]
        %v461 = vld [vmem:[%s354 + $0x40] sm:$0xff]
        %v462 = vld [vmem:[%s354 + $0x48] sm:$0xff]
        %v463 = vld [vmem:[%s354 + $0x50] sm:$0xff]
        %v464 = vld [vmem:[%s354 + $0x58] sm:$0xff]
        %v465 = vld [vmem:[%s354 + $0x60] sm:$0xff]
        %v466 = vld [vmem:[%s354 + $0x68] sm:$0xff]
        %v467 = vld [vmem:[%s354 + $0x70] sm:$0xff]
        %v468 = vld [vmem:[%s354 + $0x78] sm:$0xff]
        %v469 = vld [vmem:[%s354 + $0x80] sm:$0xff]
        %v470 = vld [vmem:[%s354 + $0x88] sm:$0xff]
        %v471 = vld [vmem:[%s354 + $0x90] sm:$0xff]
        %v472 = vld [vmem:[%s354 + $0x98] sm:$0xff]
        %v473 = vld [vmem:[%s354 + $0xa0] sm:$0xff]
        %v474 = vld [vmem:[%s354 + $0xa8] sm:$0xff]
        %v475 = vld [vmem:[%s354 + $0xb0] sm:$0xff]
        %v476 = vld [vmem:[%s354 + $0xb8] sm:$0xff]
        %v477 = vld [vmem:[%s354 + $0xc0] sm:$0xff]
        %v478 = vld [vmem:[%s354 + $0xc8] sm:$0xff]
        %v479 = vld [vmem:[%s354 + $0xd0] sm:$0xff]
        %v480 = vld [vmem:[%s354 + $0xd8] sm:$0xff]
        %v481 = vld [vmem:[%s354 + $0xe0] sm:$0xff]
        %v482 = vld [vmem:[%s354 + $0xe8] sm:$0xff]
        %v483 = vld [vmem:[%s354 + $0xf0] sm:$0xff]
        %v484 = vld [vmem:[%s354 + $0xf8] sm:$0xff]
        %v517 = vunpack.c.l.b16 %v453
        %v518 = vunpack.c.h.b16 %v453
        %v519 = vunpack.c.l.b16 %v454
        %v520 = vunpack.c.h.b16 %v454
        %v521 = vunpack.c.l.b16 %v455
        %v522 = vunpack.c.h.b16 %v455
        %v523 = vunpack.c.l.b16 %v456
        %v524 = vunpack.c.h.b16 %v456
        %v525 = vunpack.c.l.b16 %v457
        %v526 = vunpack.c.h.b16 %v457
        %v527 = vunpack.c.l.b16 %v458
        %v528 = vunpack.c.h.b16 %v458
        %v529 = vunpack.c.l.b16 %v459
        %v530 = vunpack.c.h.b16 %v459
        %v531 = vunpack.c.l.b16 %v460
        %v532 = vunpack.c.h.b16 %v460
        %v533 = vunpack.c.l.b16 %v461
        %v534 = vunpack.c.h.b16 %v461
        %v535 = vunpack.c.l.b16 %v462
        %v536 = vunpack.c.h.b16 %v462
        %v537 = vunpack.c.l.b16 %v463
        %v538 = vunpack.c.h.b16 %v463
        %v539 = vunpack.c.l.b16 %v464
        %v540 = vunpack.c.h.b16 %v464
        %v541 = vunpack.c.l.b16 %v465
        %v542 = vunpack.c.h.b16 %v465
        %v543 = vunpack.c.l.b16 %v466
        %v544 = vunpack.c.h.b16 %v466
        %v545 = vunpack.c.l.b16 %v467
        %v546 = vunpack.c.h.b16 %v467
        %v547 = vunpack.c.l.b16 %v468
        %v548 = vunpack.c.h.b16 %v468
        %v549 = vunpack.c.l.b16 %v469
        %v550 = vunpack.c.h.b16 %v469
        %v551 = vunpack.c.l.b16 %v470
        %v552 = vunpack.c.h.b16 %v470
        %v553 = vunpack.c.l.b16 %v471
        %v554 = vunpack.c.h.b16 %v471
        %v555 = vunpack.c.l.b16 %v472
        %v556 = vunpack.c.h.b16 %v472
        %v557 = vunpack.c.l.b16 %v473
        %v558 = vunpack.c.h.b16 %v473
        %v559 = vunpack.c.l.b16 %v474
        %v560 = vunpack.c.h.b16 %v474
        %v561 = vunpack.c.l.b16 %v475
        %v562 = vunpack.c.h.b16 %v475
        %v563 = vunpack.c.l.b16 %v476
        %v564 = vunpack.c.h.b16 %v476
        %v565 = vunpack.c.l.b16 %v477
        %v566 = vunpack.c.h.b16 %v477
        %v567 = vunpack.c.l.b16 %v478
        %v568 = vunpack.c.h.b16 %v478
        %v569 = vunpack.c.l.b16 %v479
        %v570 = vunpack.c.h.b16 %v479
        %v571 = vunpack.c.l.b16 %v480
        %v572 = vunpack.c.h.b16 %v480
        %v573 = vunpack.c.l.b16 %v481
        %v574 = vunpack.c.h.b16 %v481
        %v575 = vunpack.c.l.b16 %v482
        %v576 = vunpack.c.h.b16 %v482
        %v577 = vunpack.c.l.b16 %v483
        %v578 = vunpack.c.h.b16 %v483
        %v579 = vunpack.c.l.b16 %v484
        %v580 = vunpack.c.h.b16 %v484
        %v581 = vpack.c.b16 %v519, %v517
        %v582 = vpack.c.b16 %v520, %v518
        %v583 = vpack.c.b16 %v523, %v521
        %v584 = vpack.c.b16 %v524, %v522
        %v585 = vpack.c.b16 %v527, %v525
        %v586 = vpack.c.b16 %v528, %v526
        %v587 = vpack.c.b16 %v531, %v529
        %v588 = vpack.c.b16 %v532, %v530
        %v589 = vpack.c.b16 %v535, %v533
        %v590 = vpack.c.b16 %v536, %v534
        %v591 = vpack.c.b16 %v539, %v537
        %v592 = vpack.c.b16 %v540, %v538
        %v593 = vpack.c.b16 %v543, %v541
        %v594 = vpack.c.b16 %v544, %v542
        %v595 = vpack.c.b16 %v547, %v545
        %v596 = vpack.c.b16 %v548, %v546
        %v597 = vpack.c.b16 %v551, %v549
        %v598 = vpack.c.b16 %v552, %v550
        %v599 = vpack.c.b16 %v555, %v553
        %v600 = vpack.c.b16 %v556, %v554
        %v601 = vpack.c.b16 %v559, %v557
        %v602 = vpack.c.b16 %v560, %v558
        %v603 = vpack.c.b16 %v563, %v561
        %v604 = vpack.c.b16 %v564, %v562
        %v605 = vpack.c.b16 %v567, %v565
        %v606 = vpack.c.b16 %v568, %v566
        %v607 = vpack.c.b16 %v571, %v569
        %v608 = vpack.c.b16 %v572, %v570
        %v609 = vpack.c.b16 %v575, %v573
        %v610 = vpack.c.b16 %v576, %v574
        %v611 = vpack.c.b16 %v579, %v577
        %v612 = vpack.c.b16 %v580, %v578
        %645 = vmatprep.subr.bf16.mxu0 %v582
        %646 = vmatpush1.bf16.msra.mxu0 %v581
        %647 = vmatprep.subr.bf16.mxu0 %v584
        %648 = vmatpush1.bf16.msra.mxu0 %v583
        %649 = vmatprep.subr.bf16.mxu0 %v586
        %650 = vmatpush1.bf16.msra.mxu0 %v585
        %651 = vmatprep.subr.bf16.mxu0 %v588
        %652 = vmatpush1.bf16.msra.mxu0 %v587
        %653 = vmatprep.subr.bf16.mxu0 %v590
        %654 = vmatpush1.bf16.msra.mxu0 %v589
        %655 = vmatprep.subr.bf16.mxu0 %v592
        %656 = vmatpush1.bf16.msra.mxu0 %v591
        %657 = vmatprep.subr.bf16.mxu0 %v594
        %658 = vmatpush1.bf16.msra.mxu0 %v593
        %659 = vmatprep.subr.bf16.mxu0 %v596
        %660 = vmatpush1.bf16.msra.mxu0 %v595
        %661 = vmatprep.subr.bf16.mxu0 %v598
        %662 = vmatpush1.bf16.msra.mxu0 %v597
        %663 = vmatprep.subr.bf16.mxu0 %v600
        %664 = vmatpush1.bf16.msra.mxu0 %v599
        %665 = vmatprep.subr.bf16.mxu0 %v602
        %666 = vmatpush1.bf16.msra.mxu0 %v601
        %667 = vmatprep.subr.bf16.mxu0 %v604
        %668 = vmatpush1.bf16.msra.mxu0 %v603
        %669 = vmatprep.subr.bf16.mxu0 %v606
        %670 = vmatpush1.bf16.msra.mxu0 %v605
        %671 = vmatprep.subr.bf16.mxu0 %v608
        %672 = vmatpush1.bf16.msra.mxu0 %v607
        %673 = vmatprep.subr.bf16.mxu0 %v610
        %674 = vmatpush1.bf16.msra.mxu0 %v609
        %675 = vmatprep.subr.bf16.mxu0 %v612
        %676 = vmatpush1.bf16.msra.mxu0 %v611
        %677 = vmatprep.mubr.bf16.mxu0 %v452
        %678 = vmatmul.mubr.bf16.gmra.mrb[0].mxu0 %v451
        %v679 = vpop.f32.mrb[0].mxu0
        %v680 = vadd.f32 0.0, %v679
        %v681 = vpop.f32.mrb[0].mxu0
        %v682 = vadd.f32 0.0, %v681
        %v683 = vpop.f32.mrb[0].mxu0
        %v684 = vadd.f32 0.0, %v683
        %v685 = vpop.f32.mrb[0].mxu0
        %v686 = vadd.f32 0.0, %v685
        %687 = vdwg.mxu0
        %v688 = vadd.f32 %v447, %v680
        %v689 = vadd.f32 %v448, %v682
        %v690 = vadd.f32 %v449, %v684
        %v691 = vadd.f32 %v450, %v686
        %692 = vst [vmem:[#allocation2] sm:$0xff] %v688
        %693 = vst [vmem:[#allocation2 + $0x8] sm:$0xff] %v689
        %694 = vst [vmem:[#allocation2 + $0x10] sm:$0xff] %v690
        %695 = vst [vmem:[#allocation2 + $0x18] sm:$0xff] %v691
        %p696 = scmp.eq.s32.totalorder %s33, 3
        // Predicated region
        $region69: #{tpu_custom_call.1} parent=51 // pred_check
          %p697 = pneg %p696
        $region70: #{tpu_custom_call.1} parent=51 // pred_check_branch
          %699 = sbr.rel (%p697) target = $region72
        $region71: #{tpu_custom_call.1} parent=51 // pred_region
          %v700 = vld [vmem:[#allocation3] sm:$0xff]
          %v701 = vld [vmem:[#allocation3 + $0x8] sm:$0xff]
          %v702 = vmul.f32 %v700, 0.0009765625
          %v703 = vmul.f32 %v701, 0.0009765625
          %v704 = vld [vmem:[#allocation4] sm:$0xff]
          %v705 = vld [vmem:[#allocation4 + $0x8] sm:$0xff]
          %v706 = vmul.f32 %v704, 0.0009765625
          %v707 = vmul.f32 %v705, 0.0009765625
          %v708 = vmul.f32 %v702, %v702
          %v709 = vmul.f32 %v703, %v703
          %v710 = vsub.f32 %v706, %v708
          %v711 = vsub.f32 %v707, %v709
          %v712 = vadd.f32 %v710, 1e-05
          %v713 = vadd.f32 %v711, 1e-05
          %v714 = vrsqrt.pop %v712
          %v715 = vrsqrt.pop %v713
          %v716 = vld [vmem:[#allocation2] sm:$0xff]
          %v717 = vld [vmem:[#allocation2 + $0x8] sm:$0xff]
          %v718 = vld [vmem:[#allocation2 + $0x10] sm:$0xff]
          %v719 = vld [vmem:[#allocation2 + $0x18] sm:$0xff]
          %v720 = vld [vmem:[%s2] sm:$0x3]
          %722 = vset.pattern.permute.xlu0 0
          %723 = vperm.xlu0 %722, %v702
          %v724 = vpop.permute.xlu0 %723
          %727 = vset.pattern.permute.xlu0 0
          %728 = vperm.xlu0 %727, %v703
          %v729 = vpop.permute.xlu0 %728
          %v732 = vlaneseq
          %v733 = vshrl.u32 %v732, 7
          %v734 = vsub.s32 0, %v733
          %v735 = vrot.slane %v720, %v734
          %v736 = vlaneseq
          %v737 = vshrl.u32 %v736, 7
          %v738 = vsub.s32 1, %v737
          %v739 = vrot.slane %v720, %v738
          %v742 = vmul.f32 %v724, %v735
          %v743 = vmul.f32 %v724, %v739
          %v744 = vmul.f32 %v729, %v735
          %v745 = vmul.f32 %v729, %v739
          %v746 = vsub.f32 %v716, %v742
          %v747 = vsub.f32 %v717, %v743
          %v748 = vsub.f32 %v718, %v744
          %v749 = vsub.f32 %v719, %v745
          %751 = vset.pattern.permute.xlu0 0
          %752 = vperm.xlu0 %751, %v714
          %v753 = vpop.permute.xlu0 %752
          %756 = vset.pattern.permute.xlu0 0
          %757 = vperm.xlu0 %756, %v715
          %v758 = vpop.permute.xlu0 %757
          %v760 = vmul.f32 %v753, %v746
          %v761 = vmul.f32 %v753, %v747
          %v762 = vmul.f32 %v758, %v748
          %v763 = vmul.f32 %v758, %v749
          %v764 = vld [vmem:[%s3] sm:$0x3]
          %v766 = vlaneseq
          %v767 = vshrl.u32 %v766, 7
          %v768 = vsub.s32 0, %v767
          %v769 = vrot.slane %v764, %v768
          %v770 = vlaneseq
          %v771 = vshrl.u32 %v770, 7
          %v772 = vsub.s32 1, %v771
          %v773 = vrot.slane %v764, %v772
          %v776 = vadd.f32 %v760, %v769
          %v777 = vadd.f32 %v761, %v773
          %v778 = vadd.f32 %v762, %v769
          %v779 = vadd.f32 %v763, %v773
          %v780 = vmax.f32 %v776, 0.0
          %v781 = vmax.f32 %v777, 0.0
          %v782 = vmax.f32 %v778, 0.0
          %v783 = vmax.f32 %v779, 0.0
          %v784 = vpack.c.bf16 %v782, %v780
          %v785 = vpack.c.bf16 %v783, %v781
          %v786 = vld [vmem:[#allocation10] sm:$0xf]
          %v787 = vld [vmem:[#allocation10 + $0x4] sm:$0xf]
          %v788 = vld [vmem:[#allocation10 + $0x8] sm:$0xf]
          %v789 = vld [vmem:[#allocation10 + $0xc] sm:$0xf]
          %v790 = vld [vmem:[#allocation10 + $0x10] sm:$0xf]
          %v791 = vld [vmem:[#allocation10 + $0x14] sm:$0xf]
          %v792 = vld [vmem:[#allocation10 + $0x18] sm:$0xf]
          %v793 = vld [vmem:[#allocation10 + $0x1c] sm:$0xf]
          %v794 = vld [vmem:[#allocation10 + $0x20] sm:$0xf]
          %v795 = vld [vmem:[#allocation10 + $0x24] sm:$0xf]
          %v796 = vld [vmem:[#allocation10 + $0x28] sm:$0xf]
          %v797 = vld [vmem:[#allocation10 + $0x2c] sm:$0xf]
          %v798 = vld [vmem:[#allocation10 + $0x30] sm:$0xf]
          %v799 = vld [vmem:[#allocation10 + $0x34] sm:$0xf]
          %v800 = vld [vmem:[#allocation10 + $0x38] sm:$0xf]
          %v801 = vld [vmem:[#allocation10 + $0x3c] sm:$0xf]
          %v802 = vld [vmem:[#allocation10 + $0x40] sm:$0xf]
          %v803 = vld [vmem:[#allocation10 + $0x44] sm:$0xf]
          %v804 = vld [vmem:[#allocation10 + $0x48] sm:$0xf]
          %v805 = vld [vmem:[#allocation10 + $0x4c] sm:$0xf]
          %v806 = vld [vmem:[#allocation10 + $0x50] sm:$0xf]
          %v807 = vld [vmem:[#allocation10 + $0x54] sm:$0xf]
          %v808 = vld [vmem:[#allocation10 + $0x58] sm:$0xf]
          %v809 = vld [vmem:[#allocation10 + $0x5c] sm:$0xf]
          %v810 = vld [vmem:[#allocation10 + $0x60] sm:$0xf]
          %v811 = vld [vmem:[#allocation10 + $0x64] sm:$0xf]
          %v812 = vld [vmem:[#allocation10 + $0x68] sm:$0xf]
          %v813 = vld [vmem:[#allocation10 + $0x6c] sm:$0xf]
          %v814 = vld [vmem:[#allocation10 + $0x70] sm:$0xf]
          %v815 = vld [vmem:[#allocation10 + $0x74] sm:$0xf]
          %v816 = vld [vmem:[#allocation10 + $0x78] sm:$0xf]
          %v817 = vld [vmem:[#allocation10 + $0x7c] sm:$0xf]
          %v818 = vld [vmem:[%s5] sm:$0x1]
          %v820 = vlaneseq
          %v821 = vshrl.u32 %v820, 7
          %v822 = vsub.s32 0, %v821
          %v823 = vrot.slane %v818, %v822
          %v857 = vunpack.c.l.b16 %v786
          %v858 = vunpack.c.l.b16 %v787
          %v859 = vunpack.c.l.b16 %v788
          %v860 = vunpack.c.l.b16 %v789
          %v861 = vunpack.c.l.b16 %v790
          %v862 = vunpack.c.l.b16 %v791
          %v863 = vunpack.c.l.b16 %v792
          %v864 = vunpack.c.l.b16 %v793
          %v865 = vunpack.c.l.b16 %v794
          %v866 = vunpack.c.l.b16 %v795
          %v867 = vunpack.c.l.b16 %v796
          %v868 = vunpack.c.l.b16 %v797
          %v869 = vunpack.c.l.b16 %v798
          %v870 = vunpack.c.l.b16 %v799
          %v871 = vunpack.c.l.b16 %v800
          %v872 = vunpack.c.l.b16 %v801
          %v873 = vunpack.c.l.b16 %v802
          %v874 = vunpack.c.l.b16 %v803
          %v875 = vunpack.c.l.b16 %v804
          %v876 = vunpack.c.l.b16 %v805
          %v877 = vunpack.c.l.b16 %v806
          %v878 = vunpack.c.l.b16 %v807
          %v879 = vunpack.c.l.b16 %v808
          %v880 = vunpack.c.l.b16 %v809
          %v881 = vunpack.c.l.b16 %v810
          %v882 = vunpack.c.l.b16 %v811
          %v883 = vunpack.c.l.b16 %v812
          %v884 = vunpack.c.l.b16 %v813
          %v885 = vunpack.c.l.b16 %v814
          %v886 = vunpack.c.l.b16 %v815
          %v887 = vunpack.c.l.b16 %v816
          %v888 = vunpack.c.l.b16 %v817
          %v889 = vpack.c.b16 %v858, %v857
          %v890 = vpack.c.b16 %v860, %v859
          %v891 = vpack.c.b16 %v862, %v861
          %v892 = vpack.c.b16 %v864, %v863
          %v893 = vpack.c.b16 %v866, %v865
          %v894 = vpack.c.b16 %v868, %v867
          %v895 = vpack.c.b16 %v870, %v869
          %v896 = vpack.c.b16 %v872, %v871
          %v897 = vpack.c.b16 %v874, %v873
          %v898 = vpack.c.b16 %v876, %v875
          %v899 = vpack.c.b16 %v878, %v877
          %v900 = vpack.c.b16 %v880, %v879
          %v901 = vpack.c.b16 %v882, %v881
          %v902 = vpack.c.b16 %v884, %v883
          %v903 = vpack.c.b16 %v886, %v885
          %v904 = vpack.c.b16 %v888, %v887
          %921 = vmatprep.subr.bf16.mxu0 0
          %922 = vmatpush1.bf16.msra.mxu0 %v889
          %923 = vmatprep.subr.bf16.mxu0 0
          %924 = vmatpush1.bf16.msra.mxu0 %v890
          %925 = vmatprep.subr.bf16.mxu0 0
          %926 = vmatpush1.bf16.msra.mxu0 %v891
          %927 = vmatprep.subr.bf16.mxu0 0
          %928 = vmatpush1.bf16.msra.mxu0 %v892
          %929 = vmatprep.subr.bf16.mxu0 0
          %930 = vmatpush1.bf16.msra.mxu0 %v893
          %931 = vmatprep.subr.bf16.mxu0 0
          %932 = vmatpush1.bf16.msra.mxu0 %v894
          %933 = vmatprep.subr.bf16.mxu0 0
          %934 = vmatpush1.bf16.msra.mxu0 %v895
          %935 = vmatprep.subr.bf16.mxu0 0
          %936 = vmatpush1.bf16.msra.mxu0 %v896
          %937 = vmatprep.subr.bf16.mxu0 0
          %938 = vmatpush1.bf16.msra.mxu0 %v897
          %939 = vmatprep.subr.bf16.mxu0 0
          %940 = vmatpush1.bf16.msra.mxu0 %v898
          %941 = vmatprep.subr.bf16.mxu0 0
          %942 = vmatpush1.bf16.msra.mxu0 %v899
          %943 = vmatprep.subr.bf16.mxu0 0
          %944 = vmatpush1.bf16.msra.mxu0 %v900
          %945 = vmatprep.subr.bf16.mxu0 0
          %946 = vmatpush1.bf16.msra.mxu0 %v901
          %947 = vmatprep.subr.bf16.mxu0 0
          %948 = vmatpush1.bf16.msra.mxu0 %v902
          %949 = vmatprep.subr.bf16.mxu0 0
          %950 = vmatpush1.bf16.msra.mxu0 %v903
          %951 = vmatprep.subr.bf16.mxu0 0
          %952 = vmatpush1.bf16.msra.mxu0 %v904
          %953 = vmatprep.mubr.bf16.mxu0 %v785
          %954 = vmatmul.mubr.bf16.gmra.mrb[0].mxu0 %v784
          %v955 = vpop.f32.mrb[0].mxu0
          %v956 = vadd.f32 %v823, %v955
          %v957 = vpop.f32.mrb[0].mxu0
          %v958 = vpop.f32.mrb[0].mxu0
          %v959 = vadd.f32 %v823, %v958
          %v960 = vpop.f32.mrb[0].mxu0
          %961 = vdwg.mxu0
          %v962 = vmax.f32 %v956, 0.0
          %v963 = vmax.f32 %v959, 0.0
          %964 = vadd.xlane.f32.xlu0 %v962
          %v965 = vpop.xlane.xlu0 %964
          %966 = vadd.xlane.f32.xlu0 %v963
          %v967 = vpop.xlane.xlu0 %966
          %v968 = vrcp.pop 128.0
          %v969 = vmul.f32 %v965, %v968
          %v970 = vmul.f32 %v967, %v968
          %v971 = vsub.f32 %v962, %v969
          %v972 = vsub.f32 %v963, %v970
          %v973 = vmul.f32 %v971, %v971
          %v974 = vmul.f32 %v972, %v972
          %975 = vadd.xlane.f32.xlu0 %v973
          %v976 = vpop.xlane.xlu0 %975
          %977 = vadd.xlane.f32.xlu0 %v974
          %v978 = vpop.xlane.xlu0 %977
          %v979 = vmul.f32 %v976, %v968
          %v980 = vmul.f32 %v978, %v968
          %v981 = vadd.f32 %v979, 1e-05
          %v982 = vadd.f32 %v980, 1e-05
          %v983 = vrsqrt.pop %v981
          %v984 = vrsqrt.pop %v982
          %v985 = vmul.f32 %v971, %v983
          %v986 = vmul.f32 %v972, %v984
          %v987 = vld [vmem:[%s6] sm:$0x1]
          %v989 = vlaneseq
          %v990 = vshrl.u32 %v989, 7
          %v991 = vsub.s32 0, %v990
          %v992 = vrot.slane %v987, %v991
          %v994 = vmul.f32 %v985, %v992
          %v995 = vmul.f32 %v986, %v992
          %v996 = vld [vmem:[%s7] sm:$0x1]
          %v998 = vlaneseq
          %v999 = vshrl.u32 %v998, 7
          %v1000 = vsub.s32 0, %v999
          %v1001 = vrot.slane %v996, %v1000
          %v1003 = vadd.f32 %v994, %v1001
          %v1004 = vadd.f32 %v995, %v1001
          %1005 = vst [vmem:[%s395] sm:$0xff] %v1003
          %1006 = vst [vmem:[%s395 + $0x8] sm:$0xff] %v1004
        $region72: #{tpu_custom_call.1} parent=51 // pred_fallthru
          _
        %s1007 = sand.u32 %s228, 1
        %s1008 = scalar_lea.sflag [#allocation7], %s1007
        %s1009 = sand.u32 %s228, 1
        %s1010 = smul.addr %s1009, 16
        %s1011 = scalar_lea.vmem [#allocation11], %s1010
        // Predicated region
        $region73: #{tpu_custom_call.1} parent=51 // pred_check
          %p1012 = pneg %p238
        $region74: #{tpu_custom_call.1} parent=51 // pred_check_branch
          %1014 = sbr.rel (%p1012) target = $region76
        $region75: #{tpu_custom_call.1} parent=51 // pred_region
          %s1015 = smul.u32 2, %s32
          %s1017 = ssub.s32 256, 256
          %1018 = vsyncadd %s1008, %s1017
          %s1019 = smul.addr %s1015, 128
          %s1020 = scalar_lea.hbm %s8, %s1019
          %s1021 = sshll.u32 %s1011, 4
          %s1022 = int_to_ptr.vmem [resolvable:$true] %s1021
          %1027 = dma.vmem_to_hbm [thread:$0]  %s1022, 256, %s1020, %s1008, 128, 128, 8
        $region76: #{tpu_custom_call.1} parent=51 // pred_fallthru
          _
      $region52: #{tpu_custom_call.1} parent=5 // pred_fallthru
        _
      %p1028 = scmp.le.s32.totalorder 2, %s23
      // Predicated region
      $region77: #{tpu_custom_call.1} parent=5 // pred_check
        %p1029 = pneg %p1028
      $region78: #{tpu_custom_call.1} parent=5 // pred_check_branch
        %1031 = sbr.rel (%p1029) target = $region80
      $region79: #{tpu_custom_call.1} parent=5 // pred_region
        %s1032 = ssub.s32 %s23, 2
        // Predicated region
        $region81: #{tpu_custom_call.1} parent=79 // pred_check
          %p1033 = pneg %p244
        $region82: #{tpu_custom_call.1} parent=79 // pred_check_branch
          %1035 = sbr.rel (%p1033) target = $region84
        $region83: #{tpu_custom_call.1} parent=79 // pred_region
          %s1036 = sand.u32 %s229, 1
          %s1037 = scalar_lea.sflag [#allocation7], %s1036
          %s1038 = sand.u32 %s229, 1
          %s1039 = smul.addr %s1038, 16
          %s1040 = scalar_lea.vmem [#allocation11], %s1039
          %1041 = dma.done %s1037, 256
        $region84: #{tpu_custom_call.1} parent=79 // pred_fallthru
          _
      $region80: #{tpu_custom_call.1} parent=5 // pred_fallthru
        _
    $region6: #{tpu_custom_call.1} parent=1 // loop_footer
      %s27 = sadd.s32 1, %s23
    $region7: #{tpu_custom_call.1} parent=1 // loop_footer_branch
      %22 = sbr.rel target = $region3
    $region8: #{tpu_custom_call.1} parent=1 // loop_exit
      _
    %1042 = vsyncpa [#allocation6], 1
    %s1043 = scalar_lea.sflag [#allocation6], 1
    %1044 = vsyncpa %s1043, 1
    %1045 = vsyncpa [#allocation9], 1
    %s1046 = scalar_lea.sflag [#allocation9], 1
    %1047 = vsyncpa %s1046, 1
    %1048 = vsyncpa [#allocation7], 1
    %s1049 = scalar_lea.sflag [#allocation7], 1
    %1050 = vsyncpa %s1049, 1

</llo_original>
